<compile_context>
chip_gen: v7x
topology: tpu7x:2x2x1
jax: 0.10.0
libtpu: 0.0.40
codegen_flags: <defaults>
</compile_context>

<pallas_src>
import jax
import jax.numpy as jnp
from jax.experimental import pallas as pl
from jax.experimental.pallas import tpu as pltpu

EPS = 1e-5


def bottleneck_kernel(xb_ref, w1_ref, w2_ref, w3_ref, shu_ref, shd_ref,
                      pmp_ref, pmq_ref,
                      g1_ref, b1_ref, g2_ref, b2_ref, g3_ref, b3_ref,
                      out_ref):
    """Fused conv1x1+bn+relu -> conv3x3+bn+relu -> conv1x1+bn -> +res -> relu.

    Layout: activations are (H, N*W*C), lane axis is (n, w, c) with c minor.
      xb_ref       : (H, N*W*Cin)          lane-dense input (Cin == planes*4)
      w1_ref       : (N*W*Cin, N*W*Cp)     block-diagonal 1x1 weights
      w2_ref       : (3*N*W*Cp, N*W*Cp)    banded 3x3 weights, dy blocks stacked
                                           along K (W zero-padding folded in)
      w3_ref       : (N*W*Cp, N*W*Cout)    block-diagonal 1x1 weights
      shu/shd_ref  : (H, H)                eye(H,k=-1) / eye(H,k=+1) H-shift
                                           matrices (zero rows = H zero padding)
      pmp/pmq_ref  : lane->channel averaging projectors, pre-scaled by 1/(N*H*W)
      g*/b*_ref    : BN affine params pre-tiled to lane width, shape (1, N*W*C)
    """
    xb = xb_ref[...]                                      # (H, N*W*Cin)

    def bn(a, pm_ref, g_ref, b_ref):
        # Training-mode BatchNorm (biased variance over N,H,W).
        # Reduce over rows (H) FIRST, then one tiny (1,L)x(L,L) projector dot
        # that averages the (n,w) lane blocks per channel and broadcasts back.
        s = jnp.sum(a, axis=0, keepdims=True)                            # (1, L)
        mean_l = jnp.dot(s, pm_ref[...], preferred_element_type=jnp.float32)
        cent = a - mean_l
        ss = jnp.sum(cent * cent, axis=0, keepdims=True)                 # (1, L)
        var_l = jnp.dot(ss, pm_ref[...], preferred_element_type=jnp.float32)
        return cent * jax.lax.rsqrt(var_l + EPS) * g_ref[...] + b_ref[...]

    # ---- conv1 (1x1) + BN1 + ReLU: one block-diagonal matmul ---------------
    a1 = jnp.dot(xb, w1_ref[...], preferred_element_type=jnp.float32)
    y1 = jnp.maximum(bn(a1, pmp_ref, g1_ref, b1_ref), 0.0)   # (H, N*W*Cp)

    # ---- conv2 (3x3, padding=1) + BN2 + ReLU --------------------------------
    # H-direction shifts via tiny (H,H) matmuls; their zero first/last rows
    # give the H zero padding.  W padding lives in the band structure of w2.
    up = jnp.dot(shu_ref[...], y1, preferred_element_type=jnp.float32)  # row h-1
    dn = jnp.dot(shd_ref[...], y1, preferred_element_type=jnp.float32)  # row h+1
    z = jnp.concatenate([up, y1, dn], axis=1)                 # (H, 3*N*W*Cp)
    a2 = jnp.dot(z, w2_ref[...], preferred_element_type=jnp.float32)
    y2 = jnp.maximum(bn(a2, pmp_ref, g2_ref, b2_ref), 0.0)

    # ---- conv3 (1x1) + BN3 + residual + ReLU --------------------------------
    a3 = jnp.dot(y2, w3_ref[...], preferred_element_type=jnp.float32)
    y3 = bn(a3, pmq_ref, g3_ref, b3_ref)
    out_ref[...] = jnp.maximum(y3 + xb, 0.0)   # lane-dense (H, N*W*Cout) store


def prepare_params(params, N, H, W):
    """One-time transform of module weights into lane-dense kernel operands.

    Hoisted out of the jitted steady-state path (the kron / projector /
    lane-tiling work only depends on the weights and the static shape).
    """
    w1, w2, w3, g1, b1, g2, b2, g3, b3 = params
    f32 = jnp.float32
    Cp = w1.shape[1]                 # planes
    Cout = w3.shape[1]               # planes * 4

    eye_nw = jnp.eye(N * W, dtype=f32)
    w1b = jnp.kron(eye_nw, w1.astype(f32))                    # (N*W*Cin, N*W*Cp)
    w3b = jnp.kron(eye_nw, w3.astype(f32))                    # (N*W*Cp, N*W*Cout)

    # Banded 3x3 weights: W zero-padding folded into the band; the three dy
    # blocks are stacked along K so conv2 is a single matmul with K = 3*N*W*Cp.
    eye_n = jnp.eye(N, dtype=f32)

    def band(dy):
        return sum(jnp.kron(jnp.eye(W, k=1 - dx, dtype=f32), w2[dy, dx].astype(f32))
                   for dx in range(3))                        # (W*Cp, W*Cp)

    w2b = jnp.concatenate([jnp.kron(eye_n, band(dy)) for dy in range(3)],
                          axis=0)                             # (3*N*W*Cp, N*W*Cp)

    # H-shift matrices: zero first/last row => H-direction zero padding.
    sh_up = jnp.eye(H, k=-1, dtype=f32)      # (S_up @ y)[h] = y[h-1], 0 at h=0
    sh_dn = jnp.eye(H, k=1, dtype=f32)       # (S_dn @ y)[h] = y[h+1], 0 at h=H-1

    # Channel-averaging projectors for BN stats, pre-scaled by 1/(N*H*W).
    def proj(C):
        s = jnp.kron(jnp.ones((N * W, 1), f32), jnp.eye(C, dtype=f32))  # (NWC, C)
        return (s @ s.T) / float(N * H * W)                             # (NWC, NWC)

    pmp, pmq = proj(Cp), proj(Cout)

    # BN affine params pre-tiled to lane width.
    def lane(v, C):
        return jnp.tile(v.reshape(1, C).astype(f32), (1, N * W))        # (1, N*W*C)

    g1l, b1l = lane(g1, Cp), lane(b1, Cp)
    g2l, b2l = lane(g2, Cp), lane(b2, Cp)
    g3l, b3l = lane(g3, Cout), lane(b3, Cout)

    return (w1b, w2b, w3b, sh_up, sh_dn, pmp, pmq,
            g1l, b1l, g2l, b2l, g3l, b3l)


@jax.jit
def bottleneck_forward(x_nchw, prepped):
    """Bottleneck forward (stride=1, downsample=None, is_last=False)."""
    # TODO(synk): stride>1 / downsample / is_last=True (preact output) paths are
    # not implemented; this covers the module's default configuration.
    (w1b, w2b, w3b, sh_up, sh_dn, pmp, pmq,
     g1l, b1l, g2l, b2l, g3l, b3l) = prepped

    N, Cin, H, W = x_nchw.shape
    Cout = w3b.shape[1] // (N * W)

    # NCHW -> (H, N*W*Cin): rows are H (sublanes), lane axis is (n, w, c) c-minor.
    xb = jnp.transpose(x_nchw.astype(jnp.float32), (2, 0, 3, 1)).reshape(
        H, N * W * Cin)

    out = pl.pallas_call(
        bottleneck_kernel,
        out_shape=jax.ShapeDtypeStruct((H, N * W * Cout), jnp.float32),
        in_specs=[pl.BlockSpec(memory_space=pltpu.MemorySpace.VMEM)] * 14,
        out_specs=pl.BlockSpec(memory_space=pltpu.MemorySpace.VMEM),
    )(xb, w1b, w2b, w3b, sh_up, sh_dn, pmp, pmq,
      g1l, b1l, g2l, b2l, g3l, b3l)

    # (H, N*W*Cout) -> NCHW
    return jnp.transpose(out.reshape(H, N, W, Cout), (1, 3, 0, 2))


def reference_forward(x_nchw, params):
    """Pure-JAX reference (NCHW), mirroring the PyTorch Bottleneck module."""
    w1, w2, w3, g1, b1, g2, b2, g3, b3 = params

    def conv1x1(x, w):             # w: (Cin, Cout)
        w_oihw = w.T[:, :, None, None]
        return jax.lax.conv_general_dilated(
            x, w_oihw, window_strides=(1, 1), padding="VALID",
            dimension_numbers=("NCHW", "OIHW", "NCHW"))

    def conv3x3(x, w):             # w: (3, 3, Cin, Cout) HWIO
        w_oihw = jnp.transpose(w, (3, 2, 0, 1))
        return jax.lax.conv_general_dilated(
            x, w_oihw, window_strides=(1, 1), padding=((1, 1), (1, 1)),
            dimension_numbers=("NCHW", "OIHW", "NCHW"))

    def bn(x, g, b):
        m = jnp.mean(x, axis=(0, 2, 3), keepdims=True)
        v = jnp.mean((x - m) ** 2, axis=(0, 2, 3), keepdims=True)
        return ((x - m) * jax.lax.rsqrt(v + EPS) * g.reshape(1, -1, 1, 1)
                + b.reshape(1, -1, 1, 1))

    out = jax.nn.relu(bn(conv1x1(x_nchw, w1), g1, b1))
    out = jax.nn.relu(bn(conv3x3(out, w2), g2, b2))
    out = bn(conv1x1(out, w3), g3, b3)
    return jax.nn.relu(out + x_nchw)    # downsample=None, is_last=False


if __name__ == "__main__":
    # Bottleneck(inplanes=16, planes=4, stride=1, downsample=None, is_last=False)
    N, PLANES, H, W = 2, 4, 16, 16
    CIN = PLANES * 4               # expansion=4; downsample=None => inplanes == planes*4

    key = jax.random.PRNGKey(0)
    kx, k1, k2, k3, kg = jax.random.split(key, 5)
    x = jax.random.normal(kx, (N, CIN, H, W), jnp.float32)

    w1 = 0.1 * jax.random.normal(k1, (CIN, PLANES), jnp.float32)           # 1x1
    w2 = 0.1 * jax.random.normal(k2, (3, 3, PLANES, PLANES), jnp.float32)  # 3x3 (HWIO)
    w3 = 0.1 * jax.random.normal(k3, (PLANES, CIN), jnp.float32)           # 1x1

    kg1, kb1, kg2, kb2, kg3, kb3 = jax.random.split(kg, 6)
    g1 = 1.0 + 0.1 * jax.random.normal(kg1, (PLANES,), jnp.float32)
    b1 = 0.1 * jax.random.normal(kb1, (PLANES,), jnp.float32)
    g2 = 1.0 + 0.1 * jax.random.normal(kg2, (PLANES,), jnp.float32)
    b2 = 0.1 * jax.random.normal(kb2, (PLANES,), jnp.float32)
    g3 = 1.0 + 0.1 * jax.random.normal(kg3, (CIN,), jnp.float32)
    b3 = 0.1 * jax.random.normal(kb3, (CIN,), jnp.float32)

    params = (w1, w2, w3, g1, b1, g2, b2, g3, b3)

    # One-time weight preprocessing (outside the jitted hot path).
    prepped = jax.tree.map(jax.block_until_ready, prepare_params(params, N, H, W))

    out = jax.block_until_ready(bottleneck_forward(x, prepped))
    ref = jax.block_until_ready(reference_forward(x, params))

    assert out.shape == (N, CIN, H, W)
    err = jnp.max(jnp.abs(out - ref))
    assert jnp.allclose(out, ref, atol=1e-3, rtol=1e-3), f"max abs err {err}"
    print("KERNEL_OK")
</pallas_src>

<mosaic_0001>
module attributes {stable_mosaic.version = 11 : i64} {
  func.func @bottleneck_kernel(%arg0: memref<16x512xf32, #tpu.memory_space<vmem>>, %arg1: memref<512x128xf32, #tpu.memory_space<vmem>>, %arg2: memref<384x128xf32, #tpu.memory_space<vmem>>, %arg3: memref<128x512xf32, #tpu.memory_space<vmem>>, %arg4: memref<16x16xf32, #tpu.memory_space<vmem>>, %arg5: memref<16x16xf32, #tpu.memory_space<vmem>>, %arg6: memref<128x128xf32, #tpu.memory_space<vmem>>, %arg7: memref<512x512xf32, #tpu.memory_space<vmem>>, %arg8: memref<1x128xf32, #tpu.memory_space<vmem>>, %arg9: memref<1x128xf32, #tpu.memory_space<vmem>>, %arg10: memref<1x128xf32, #tpu.memory_space<vmem>>, %arg11: memref<1x128xf32, #tpu.memory_space<vmem>>, %arg12: memref<1x512xf32, #tpu.memory_space<vmem>>, %arg13: memref<1x512xf32, #tpu.memory_space<vmem>>, %arg14: memref<16x512xf32, #tpu.memory_space<vmem>>) attributes {dimension_semantics = [], scalar_prefetch = 0 : i64, scratch_operands = 0 : i64, tpu.core_type = #tpu.core_type<tc>} {
    %c0 = arith.constant 0 : index
    %c0_0 = arith.constant 0 : index
    %0 = vector.load %arg0[%c0, %c0_0] : memref<16x512xf32, #tpu.memory_space<vmem>>, vector<16x512xf32>
    %c0_1 = arith.constant 0 : index
    %c0_2 = arith.constant 0 : index
    %1 = vector.load %arg1[%c0_1, %c0_2] : memref<512x128xf32, #tpu.memory_space<vmem>>, vector<512x128xf32>
    %cst = arith.constant dense<0.000000e+00> : vector<16x128xf32>
    %2 = tpu.matmul %0, %1, %cst {dimension_numbers = #tpu.dot_dimension_numbers<[1], [0], [0], [1], [0, 0, 1, 1], [], []>} : vector<16x512xf32>, vector<512x128xf32>, vector<16x128xf32> -> vector<16x128xf32>
    %cst_3 = arith.constant dense<0.000000e+00> : vector<128xf32>
    %3 = vector.multi_reduction <add>, %2, %cst_3 [0] : vector<16x128xf32> to vector<128xf32>
    %4 = vector.shape_cast %3 : vector<128xf32> to vector<1x128xf32>
    %c0_4 = arith.constant 0 : index
    %c0_5 = arith.constant 0 : index
    %5 = vector.load %arg6[%c0_4, %c0_5] : memref<128x128xf32, #tpu.memory_space<vmem>>, vector<128x128xf32>
    %cst_6 = arith.constant dense<0.000000e+00> : vector<1x128xf32>
    %6 = tpu.matmul %4, %5, %cst_6 {dimension_numbers = #tpu.dot_dimension_numbers<[1], [0], [0], [1], [0, 0, 1, 1], [], []>} : vector<1x128xf32>, vector<128x128xf32>, vector<1x128xf32> -> vector<1x128xf32>
    %7 = vector.broadcast %6 : vector<1x128xf32> to vector<16x128xf32>
    %8 = arith.subf %2, %7 : vector<16x128xf32>
    %9 = arith.mulf %8, %8 : vector<16x128xf32>
    %cst_7 = arith.constant dense<0.000000e+00> : vector<128xf32>
    %10 = vector.multi_reduction <add>, %9, %cst_7 [0] : vector<16x128xf32> to vector<128xf32>
    %11 = vector.shape_cast %10 : vector<128xf32> to vector<1x128xf32>
    %c0_8 = arith.constant 0 : index
    %c0_9 = arith.constant 0 : index
    %12 = vector.load %arg6[%c0_8, %c0_9] : memref<128x128xf32, #tpu.memory_space<vmem>>, vector<128x128xf32>
    %cst_10 = arith.constant dense<0.000000e+00> : vector<1x128xf32>
    %13 = tpu.matmul %11, %12, %cst_10 {dimension_numbers = #tpu.dot_dimension_numbers<[1], [0], [0], [1], [0, 0, 1, 1], [], []>} : vector<1x128xf32>, vector<128x128xf32>, vector<1x128xf32> -> vector<1x128xf32>
    %cst_11 = arith.constant 9.99999974E-6 : f32
    %14 = vector.broadcast %cst_11 : f32 to vector<1x128xf32>
    %15 = arith.addf %13, %14 : vector<1x128xf32>
    %16 = math.rsqrt %15 : vector<1x128xf32>
    %17 = vector.broadcast %16 : vector<1x128xf32> to vector<16x128xf32>
    %18 = arith.mulf %8, %17 : vector<16x128xf32>
    %c0_12 = arith.constant 0 : index
    %c0_13 = arith.constant 0 : index
    %19 = vector.load %arg8[%c0_12, %c0_13] : memref<1x128xf32, #tpu.memory_space<vmem>>, vector<1x128xf32>
    %20 = vector.broadcast %19 : vector<1x128xf32> to vector<16x128xf32>
    %21 = arith.mulf %18, %20 : vector<16x128xf32>
    %c0_14 = arith.constant 0 : index
    %c0_15 = arith.constant 0 : index
    %22 = vector.load %arg9[%c0_14, %c0_15] : memref<1x128xf32, #tpu.memory_space<vmem>>, vector<1x128xf32>
    %23 = vector.broadcast %22 : vector<1x128xf32> to vector<16x128xf32>
    %24 = arith.addf %21, %23 : vector<16x128xf32>
    %cst_16 = arith.constant 0.000000e+00 : f32
    %25 = vector.broadcast %cst_16 : f32 to vector<16x128xf32>
    %26 = arith.maximumf %24, %25 : vector<16x128xf32>
    %c0_17 = arith.constant 0 : index
    %c0_18 = arith.constant 0 : index
    %27 = vector.load %arg4[%c0_17, %c0_18] : memref<16x16xf32, #tpu.memory_space<vmem>>, vector<16x16xf32>
    %cst_19 = arith.constant dense<0.000000e+00> : vector<16x128xf32>
    %28 = tpu.matmul %27, %26, %cst_19 {dimension_numbers = #tpu.dot_dimension_numbers<[1], [0], [0], [1], [0, 0, 1, 1], [], []>} : vector<16x16xf32>, vector<16x128xf32>, vector<16x128xf32> -> vector<16x128xf32>
    %c0_20 = arith.constant 0 : index
    %c0_21 = arith.constant 0 : index
    %29 = vector.load %arg5[%c0_20, %c0_21] : memref<16x16xf32, #tpu.memory_space<vmem>>, vector<16x16xf32>
    %cst_22 = arith.constant dense<0.000000e+00> : vector<16x128xf32>
    %30 = tpu.matmul %29, %26, %cst_22 {dimension_numbers = #tpu.dot_dimension_numbers<[1], [0], [0], [1], [0, 0, 1, 1], [], []>} : vector<16x16xf32>, vector<16x128xf32>, vector<16x128xf32> -> vector<16x128xf32>
    %31 = tpu.concatenate %28, %26, %30 in 1 : vector<16x128xf32>, vector<16x128xf32>, vector<16x128xf32> -> vector<16x384xf32>
    %c0_23 = arith.constant 0 : index
    %c0_24 = arith.constant 0 : index
    %32 = vector.load %arg2[%c0_23, %c0_24] : memref<384x128xf32, #tpu.memory_space<vmem>>, vector<384x128xf32>
    %cst_25 = arith.constant dense<0.000000e+00> : vector<16x128xf32>
    %33 = tpu.matmul %31, %32, %cst_25 {dimension_numbers = #tpu.dot_dimension_numbers<[1], [0], [0], [1], [0, 0, 1, 1], [], []>} : vector<16x384xf32>, vector<384x128xf32>, vector<16x128xf32> -> vector<16x128xf32>
    %cst_26 = arith.constant dense<0.000000e+00> : vector<128xf32>
    %34 = vector.multi_reduction <add>, %33, %cst_26 [0] : vector<16x128xf32> to vector<128xf32>
    %35 = vector.shape_cast %34 : vector<128xf32> to vector<1x128xf32>
    %c0_27 = arith.constant 0 : index
    %c0_28 = arith.constant 0 : index
    %36 = vector.load %arg6[%c0_27, %c0_28] : memref<128x128xf32, #tpu.memory_space<vmem>>, vector<128x128xf32>
    %cst_29 = arith.constant dense<0.000000e+00> : vector<1x128xf32>
    %37 = tpu.matmul %35, %36, %cst_29 {dimension_numbers = #tpu.dot_dimension_numbers<[1], [0], [0], [1], [0, 0, 1, 1], [], []>} : vector<1x128xf32>, vector<128x128xf32>, vector<1x128xf32> -> vector<1x128xf32>
    %38 = vector.broadcast %37 : vector<1x128xf32> to vector<16x128xf32>
    %39 = arith.subf %33, %38 : vector<16x128xf32>
    %40 = arith.mulf %39, %39 : vector<16x128xf32>
    %cst_30 = arith.constant dense<0.000000e+00> : vector<128xf32>
    %41 = vector.multi_reduction <add>, %40, %cst_30 [0] : vector<16x128xf32> to vector<128xf32>
    %42 = vector.shape_cast %41 : vector<128xf32> to vector<1x128xf32>
    %c0_31 = arith.constant 0 : index
    %c0_32 = arith.constant 0 : index
    %43 = vector.load %arg6[%c0_31, %c0_32] : memref<128x128xf32, #tpu.memory_space<vmem>>, vector<128x128xf32>
    %cst_33 = arith.constant dense<0.000000e+00> : vector<1x128xf32>
    %44 = tpu.matmul %42, %43, %cst_33 {dimension_numbers = #tpu.dot_dimension_numbers<[1], [0], [0], [1], [0, 0, 1, 1], [], []>} : vector<1x128xf32>, vector<128x128xf32>, vector<1x128xf32> -> vector<1x128xf32>
    %cst_34 = arith.constant 9.99999974E-6 : f32
    %45 = vector.broadcast %cst_34 : f32 to vector<1x128xf32>
    %46 = arith.addf %44, %45 : vector<1x128xf32>
    %47 = math.rsqrt %46 : vector<1x128xf32>
    %48 = vector.broadcast %47 : vector<1x128xf32> to vector<16x128xf32>
    %49 = arith.mulf %39, %48 : vector<16x128xf32>
    %c0_35 = arith.constant 0 : index
    %c0_36 = arith.constant 0 : index
    %50 = vector.load %arg10[%c0_35, %c0_36] : memref<1x128xf32, #tpu.memory_space<vmem>>, vector<1x128xf32>
    %51 = vector.broadcast %50 : vector<1x128xf32> to vector<16x128xf32>
    %52 = arith.mulf %49, %51 : vector<16x128xf32>
    %c0_37 = arith.constant 0 : index
    %c0_38 = arith.constant 0 : index
    %53 = vector.load %arg11[%c0_37, %c0_38] : memref<1x128xf32, #tpu.memory_space<vmem>>, vector<1x128xf32>
    %54 = vector.broadcast %53 : vector<1x128xf32> to vector<16x128xf32>
    %55 = arith.addf %52, %54 : vector<16x128xf32>
    %cst_39 = arith.constant 0.000000e+00 : f32
    %56 = vector.broadcast %cst_39 : f32 to vector<16x128xf32>
    %57 = arith.maximumf %55, %56 : vector<16x128xf32>
    %c0_40 = arith.constant 0 : index
    %c0_41 = arith.constant 0 : index
    %58 = vector.load %arg3[%c0_40, %c0_41] : memref<128x512xf32, #tpu.memory_space<vmem>>, vector<128x512xf32>
    %cst_42 = arith.constant dense<0.000000e+00> : vector<16x512xf32>
    %59 = tpu.matmul %57, %58, %cst_42 {dimension_numbers = #tpu.dot_dimension_numbers<[1], [0], [0], [1], [0, 0, 1, 1], [], []>} : vector<16x128xf32>, vector<128x512xf32>, vector<16x512xf32> -> vector<16x512xf32>
    %cst_43 = arith.constant dense<0.000000e+00> : vector<512xf32>
    %60 = vector.multi_reduction <add>, %59, %cst_43 [0] : vector<16x512xf32> to vector<512xf32>
    %61 = vector.shape_cast %60 : vector<512xf32> to vector<1x512xf32>
    %c0_44 = arith.constant 0 : index
    %c0_45 = arith.constant 0 : index
    %62 = vector.load %arg7[%c0_44, %c0_45] : memref<512x512xf32, #tpu.memory_space<vmem>>, vector<512x512xf32>
    %cst_46 = arith.constant dense<0.000000e+00> : vector<1x512xf32>
    %63 = tpu.matmul %61, %62, %cst_46 {dimension_numbers = #tpu.dot_dimension_numbers<[1], [0], [0], [1], [0, 0, 1, 1], [], []>} : vector<1x512xf32>, vector<512x512xf32>, vector<1x512xf32> -> vector<1x512xf32>
    %64 = vector.broadcast %63 : vector<1x512xf32> to vector<16x512xf32>
    %65 = arith.subf %59, %64 : vector<16x512xf32>
    %66 = arith.mulf %65, %65 : vector<16x512xf32>
    %cst_47 = arith.constant dense<0.000000e+00> : vector<512xf32>
    %67 = vector.multi_reduction <add>, %66, %cst_47 [0] : vector<16x512xf32> to vector<512xf32>
    %68 = vector.shape_cast %67 : vector<512xf32> to vector<1x512xf32>
    %c0_48 = arith.constant 0 : index
    %c0_49 = arith.constant 0 : index
    %69 = vector.load %arg7[%c0_48, %c0_49] : memref<512x512xf32, #tpu.memory_space<vmem>>, vector<512x512xf32>
    %cst_50 = arith.constant dense<0.000000e+00> : vector<1x512xf32>
    %70 = tpu.matmul %68, %69, %cst_50 {dimension_numbers = #tpu.dot_dimension_numbers<[1], [0], [0], [1], [0, 0, 1, 1], [], []>} : vector<1x512xf32>, vector<512x512xf32>, vector<1x512xf32> -> vector<1x512xf32>
    %cst_51 = arith.constant 9.99999974E-6 : f32
    %71 = vector.broadcast %cst_51 : f32 to vector<1x512xf32>
    %72 = arith.addf %70, %71 : vector<1x512xf32>
    %73 = math.rsqrt %72 : vector<1x512xf32>
    %74 = vector.broadcast %73 : vector<1x512xf32> to vector<16x512xf32>
    %75 = arith.mulf %65, %74 : vector<16x512xf32>
    %c0_52 = arith.constant 0 : index
    %c0_53 = arith.constant 0 : index
    %76 = vector.load %arg12[%c0_52, %c0_53] : memref<1x512xf32, #tpu.memory_space<vmem>>, vector<1x512xf32>
    %77 = vector.broadcast %76 : vector<1x512xf32> to vector<16x512xf32>
    %78 = arith.mulf %75, %77 : vector<16x512xf32>
    %c0_54 = arith.constant 0 : index
    %c0_55 = arith.constant 0 : index
    %79 = vector.load %arg13[%c0_54, %c0_55] : memref<1x512xf32, #tpu.memory_space<vmem>>, vector<1x512xf32>
    %80 = vector.broadcast %79 : vector<1x512xf32> to vector<16x512xf32>
    %81 = arith.addf %78, %80 : vector<16x512xf32>
    %82 = arith.addf %81, %0 : vector<16x512xf32>
    %cst_56 = arith.constant 0.000000e+00 : f32
    %83 = vector.broadcast %cst_56 : f32 to vector<16x512xf32>
    %84 = arith.maximumf %82, %83 : vector<16x512xf32>
    %c0_57 = arith.constant 0 : index
    %c0_58 = arith.constant 0 : index
    %85 = vector.load %arg14[%c0_57, %c0_58] : memref<16x512xf32, #tpu.memory_space<vmem>>, vector<16x512xf32>
    tpu.vector_store %arg14[%c0_57, %c0_58], %84 {strides = array<i32>} : memref<16x512xf32, #tpu.memory_space<vmem>>, vector<16x512xf32>,
    return
  }
}

</mosaic_0001>

<llo_original>
// kernel: bottleneck_forward.1
$region0: #{bottleneck_forward.1}
  #allocation0 [shape = 'u32[]', space=smem, size = 0x4, offset = 0x4, fixed_abs, tag = 'smem constant byte address 0x4 - core index']
  #allocation1 [shape = 'u32[144,128]{1,0:T(1,128)}', space=vmem, size = 0x12000, scoped, tag = 'internal scratch']
  %s0 = inlined_call_operand.vmem [shape: f32[16,512], index: 0, kind: input, shape index: {}]
  %s1 = inlined_call_operand.vmem [shape: f32[512,128], index: 1, kind: input, shape index: {}]
  %s2 = inlined_call_operand.vmem [shape: f32[384,128], index: 2, kind: input, shape index: {}]
  %s3 = inlined_call_operand.vmem [shape: f32[128,512], index: 3, kind: input, shape index: {}]
  %s4 = inlined_call_operand.vmem [shape: f32[16,16], index: 4, kind: input, shape index: {}]
  %s5 = inlined_call_operand.vmem [shape: f32[16,16], index: 5, kind: input, shape index: {}]
  %s6 = inlined_call_operand.vmem [shape: f32[128,128], index: 6, kind: input, shape index: {}]
  %s7 = inlined_call_operand.hbm [shape: f32[512,512], index: 7, kind: input, shape index: {}]
  %s8 = inlined_call_operand.vmem [shape: f32[1,128], index: 8, kind: input, shape index: {}]
  %s9 = inlined_call_operand.vmem [shape: f32[1,128], index: 9, kind: input, shape index: {}]
  %s10 = inlined_call_operand.vmem [shape: f32[1,128], index: 10, kind: input, shape index: {}]
  %s11 = inlined_call_operand.vmem [shape: f32[1,128], index: 11, kind: input, shape index: {}]
  %s12 = inlined_call_operand.vmem [shape: f32[1,512], index: 12, kind: input, shape index: {}]
  %s13 = inlined_call_operand.vmem [shape: f32[1,512], index: 13, kind: input, shape index: {}]
  %s14 = inlined_call_operand.vmem [shape: f32[16,512], index: 14, kind: output, shape index: {}]
  %s15 = sld [smem:[#allocation0]]
  $region70: #{bottleneck_forward.1} parent=0
    _
  %s17 = ssub.s32 1, %s15
  %s18 = scalar_select 0, %s17, %s15
  $region1: #{bottleneck_forward.1} parent=0
    #allocation2 [shape = 'u8[1048576]{0}', space=vmem, size = 0x100000, scoped, tag = 'input window, operand 7, single buffered']
    #allocation3 [shape = 's32[1]{0}', space=sflag, size = 0x4, scoped, tag = 'scoped memory for bottleneck_forward.1']
    %19 = vsyncpa [#allocation3], 0
    // Predicated region
    $region2: #{bottleneck_forward.1} parent=1 // pred_check
      _
    $region3: #{bottleneck_forward.1} parent=1 // pred_check_branch
      %21 = sbr.rel (0) target = $region5
    $region4: #{bottleneck_forward.1} parent=1 // pred_region
      _
    $region5: #{bottleneck_forward.1} parent=1 // pred_fallthru
      _
    // Predicated region
    $region6: #{bottleneck_forward.1} parent=1 // pred_check
      _
    $region7: #{bottleneck_forward.1} parent=1 // pred_check_branch
      %23 = sbr.rel (0) target = $region9
    $region8: #{bottleneck_forward.1} parent=1 // pred_region
      _
    $region9: #{bottleneck_forward.1} parent=1 // pred_fallthru
      _
    // Predicated region
    $region10: #{bottleneck_forward.1} parent=1 // pred_check
      _
    $region11: #{bottleneck_forward.1} parent=1 // pred_check_branch
      %25 = sbr.rel (0) target = $region13
    $region12: #{bottleneck_forward.1} parent=1 // pred_region
      _
    $region13: #{bottleneck_forward.1} parent=1 // pred_fallthru
      _
    // Predicated region
    $region14: #{bottleneck_forward.1} parent=1 // pred_check
      _
    $region15: #{bottleneck_forward.1} parent=1 // pred_check_branch
      %27 = sbr.rel (0) target = $region17
    $region16: #{bottleneck_forward.1} parent=1 // pred_region
      _
    $region17: #{bottleneck_forward.1} parent=1 // pred_fallthru
      _
    // Predicated region
    $region18: #{bottleneck_forward.1} parent=1 // pred_check
      _
    $region19: #{bottleneck_forward.1} parent=1 // pred_check_branch
      %29 = sbr.rel (0) target = $region21
    $region20: #{bottleneck_forward.1} parent=1 // pred_region
      _
    $region21: #{bottleneck_forward.1} parent=1 // pred_fallthru
      _
    // Predicated region
    $region22: #{bottleneck_forward.1} parent=1 // pred_check
      _
    $region23: #{bottleneck_forward.1} parent=1 // pred_check_branch
      %31 = sbr.rel (0) target = $region25
    $region24: #{bottleneck_forward.1} parent=1 // pred_region
      _
    $region25: #{bottleneck_forward.1} parent=1 // pred_fallthru
      _
    // Predicated region
    $region26: #{bottleneck_forward.1} parent=1 // pred_check
      _
    $region27: #{bottleneck_forward.1} parent=1 // pred_check_branch
      %33 = sbr.rel (0) target = $region29
    $region28: #{bottleneck_forward.1} parent=1 // pred_region
      _
    $region29: #{bottleneck_forward.1} parent=1 // pred_fallthru
      _
    // Predicated region
    $region30: #{bottleneck_forward.1} parent=1 // pred_check
      _
    $region31: #{bottleneck_forward.1} parent=1 // pred_check_branch
      %35 = sbr.rel (0) target = $region33
    $region32: #{bottleneck_forward.1} parent=1 // pred_region
      %s37 = ssub.s32 32768, 32768
      %38 = vsyncadd [#allocation3], %s37
      %s39 = sshll.u32 [#allocation2], 4
      %s40 = int_to_ptr.vmem [resolvable:$true] %s39
      %45 = dma.hbm_to_vmem [thread:$0]  %s7, 32768, %s40, [#allocation3], 512, 512, 32
    $region33: #{bottleneck_forward.1} parent=1 // pred_fallthru
      _
    // Predicated region
    $region34: #{bottleneck_forward.1} parent=1 // pred_check
      _
    $region35: #{bottleneck_forward.1} parent=1 // pred_check_branch
      %47 = sbr.rel (0) target = $region37
    $region36: #{bottleneck_forward.1} parent=1 // pred_region
      _
    $region37: #{bottleneck_forward.1} parent=1 // pred_fallthru
      _
    // Predicated region
    $region38: #{bottleneck_forward.1} parent=1 // pred_check
      _
    $region39: #{bottleneck_forward.1} parent=1 // pred_check_branch
      %49 = sbr.rel (0) target = $region41
    $region40: #{bottleneck_forward.1} parent=1 // pred_region
      _
    $region41: #{bottleneck_forward.1} parent=1 // pred_fallthru
      _
    // Predicated region
    $region42: #{bottleneck_forward.1} parent=1 // pred_check
      _
    $region43: #{bottleneck_forward.1} parent=1 // pred_check_branch
      %51 = sbr.rel (0) target = $region45
    $region44: #{bottleneck_forward.1} parent=1 // pred_region
      _
    $region45: #{bottleneck_forward.1} parent=1 // pred_fallthru
      _
    // Predicated region
    $region46: #{bottleneck_forward.1} parent=1 // pred_check
      _
    $region47: #{bottleneck_forward.1} parent=1 // pred_check_branch
      %53 = sbr.rel (0) target = $region49
    $region48: #{bottleneck_forward.1} parent=1 // pred_region
      _
    $region49: #{bottleneck_forward.1} parent=1 // pred_fallthru
      _
    // Predicated region
    $region50: #{bottleneck_forward.1} parent=1 // pred_check
      _
    $region51: #{bottleneck_forward.1} parent=1 // pred_check_branch
      %55 = sbr.rel (0) target = $region53
    $region52: #{bottleneck_forward.1} parent=1 // pred_region
      _
    $region53: #{bottleneck_forward.1} parent=1 // pred_fallthru
      _
    // Predicated region
    $region54: #{bottleneck_forward.1} parent=1 // pred_check
      _
    $region55: #{bottleneck_forward.1} parent=1 // pred_check_branch
      %57 = sbr.rel (0) target = $region57
    $region56: #{bottleneck_forward.1} parent=1 // pred_region
      _
    $region57: #{bottleneck_forward.1} parent=1 // pred_fallthru
      _
    // Predicated region
    $region58: #{bottleneck_forward.1} parent=1 // pred_check
      _
    $region59: #{bottleneck_forward.1} parent=1 // pred_check_branch
      %59 = sbr.rel (0) target = $region61
    $region60: #{bottleneck_forward.1} parent=1 // pred_region
      %60 = dma.done [#allocation3], 32768
    $region61: #{bottleneck_forward.1} parent=1 // pred_fallthru
      _
    %v61 = vld [vmem:[%s0] sm:$0xff]
    %v62 = vld [vmem:[%s0 + $0x8] sm:$0xff]
    %v63 = vld [vmem:[%s0 + $0x10] sm:$0xff]
    %v64 = vld [vmem:[%s0 + $0x18] sm:$0xff]
    %v65 = vld [vmem:[%s0 + $0x20] sm:$0xff]
    %v66 = vld [vmem:[%s0 + $0x28] sm:$0xff]
    %v67 = vld [vmem:[%s0 + $0x30] sm:$0xff]
    %v68 = vld [vmem:[%s0 + $0x38] sm:$0xff]
    %v69 = vld [vmem:[%s1] sm:$0xff]
    %v70 = vld [vmem:[%s1 + $0x8] sm:$0xff]
    %v71 = vld [vmem:[%s1 + $0x10] sm:$0xff]
    %v72 = vld [vmem:[%s1 + $0x18] sm:$0xff]
    %v73 = vld [vmem:[%s1 + $0x20] sm:$0xff]
    %v74 = vld [vmem:[%s1 + $0x28] sm:$0xff]
    %v75 = vld [vmem:[%s1 + $0x30] sm:$0xff]
    %v76 = vld [vmem:[%s1 + $0x38] sm:$0xff]
    %v77 = vld [vmem:[%s1 + $0x40] sm:$0xff]
    %v78 = vld [vmem:[%s1 + $0x48] sm:$0xff]
    %v79 = vld [vmem:[%s1 + $0x50] sm:$0xff]
    %v80 = vld [vmem:[%s1 + $0x58] sm:$0xff]
    %v81 = vld [vmem:[%s1 + $0x60] sm:$0xff]
    %v82 = vld [vmem:[%s1 + $0x68] sm:$0xff]
    %v83 = vld [vmem:[%s1 + $0x70] sm:$0xff]
    %v84 = vld [vmem:[%s1 + $0x78] sm:$0xff]
    %v85 = vld [vmem:[%s1 + $0x80] sm:$0xff]
    %v86 = vld [vmem:[%s1 + $0x88] sm:$0xff]
    %v87 = vld [vmem:[%s1 + $0x90] sm:$0xff]
    %v88 = vld [vmem:[%s1 + $0x98] sm:$0xff]
    %v89 = vld [vmem:[%s1 + $0xa0] sm:$0xff]
    %v90 = vld [vmem:[%s1 + $0xa8] sm:$0xff]
    %v91 = vld [vmem:[%s1 + $0xb0] sm:$0xff]
    %v92 = vld [vmem:[%s1 + $0xb8] sm:$0xff]
    %v93 = vld [vmem:[%s1 + $0xc0] sm:$0xff]
    %v94 = vld [vmem:[%s1 + $0xc8] sm:$0xff]
    %v95 = vld [vmem:[%s1 + $0xd0] sm:$0xff]
    %v96 = vld [vmem:[%s1 + $0xd8] sm:$0xff]
    %v97 = vld [vmem:[%s1 + $0xe0] sm:$0xff]
    %v98 = vld [vmem:[%s1 + $0xe8] sm:$0xff]
    %v99 = vld [vmem:[%s1 + $0xf0] sm:$0xff]
    %v100 = vld [vmem:[%s1 + $0xf8] sm:$0xff]
    %v101 = vld [vmem:[%s1 + $0x100] sm:$0xff]
    %v102 = vld [vmem:[%s1 + $0x108] sm:$0xff]
    %v103 = vld [vmem:[%s1 + $0x110] sm:$0xff]
    %v104 = vld [vmem:[%s1 + $0x118] sm:$0xff]
    %v105 = vld [vmem:[%s1 + $0x120] sm:$0xff]
    %v106 = vld [vmem:[%s1 + $0x128] sm:$0xff]
    %v107 = vld [vmem:[%s1 + $0x130] sm:$0xff]
    %v108 = vld [vmem:[%s1 + $0x138] sm:$0xff]
    %v109 = vld [vmem:[%s1 + $0x140] sm:$0xff]
    %v110 = vld [vmem:[%s1 + $0x148] sm:$0xff]
    %v111 = vld [vmem:[%s1 + $0x150] sm:$0xff]
    %v112 = vld [vmem:[%s1 + $0x158] sm:$0xff]
    %v113 = vld [vmem:[%s1 + $0x160] sm:$0xff]
    %v114 = vld [vmem:[%s1 + $0x168] sm:$0xff]
    %v115 = vld [vmem:[%s1 + $0x170] sm:$0xff]
    %v116 = vld [vmem:[%s1 + $0x178] sm:$0xff]
    %v117 = vld [vmem:[%s1 + $0x180] sm:$0xff]
    %v118 = vld [vmem:[%s1 + $0x188] sm:$0xff]
    %v119 = vld [vmem:[%s1 + $0x190] sm:$0xff]
    %v120 = vld [vmem:[%s1 + $0x198] sm:$0xff]
    %v121 = vld [vmem:[%s1 + $0x1a0] sm:$0xff]
    %v122 = vld [vmem:[%s1 + $0x1a8] sm:$0xff]
    %v123 = vld [vmem:[%s1 + $0x1b0] sm:$0xff]
    %v124 = vld [vmem:[%s1 + $0x1b8] sm:$0xff]
    %v125 = vld [vmem:[%s1 + $0x1c0] sm:$0xff]
    %v126 = vld [vmem:[%s1 + $0x1c8] sm:$0xff]
    %v127 = vld [vmem:[%s1 + $0x1d0] sm:$0xff]
    %v128 = vld [vmem:[%s1 + $0x1d8] sm:$0xff]
    %v129 = vld [vmem:[%s1 + $0x1e0] sm:$0xff]
    %v130 = vld [vmem:[%s1 + $0x1e8] sm:$0xff]
    %v131 = vld [vmem:[%s1 + $0x1f0] sm:$0xff]
    %v132 = vld [vmem:[%s1 + $0x1f8] sm:$0xff]
    %133 = vmatprep.subr.mxu0 0.0
    %134 = vmatpush1.msra.mxu0 %v69
    %135 = vmatprep.subr.mxu0 0.0
    %136 = vmatpush1.msra.mxu0 %v70
    %137 = vmatprep.subr.mxu0 0.0
    %138 = vmatpush1.msra.mxu0 %v71
    %139 = vmatprep.subr.mxu0 0.0
    %140 = vmatpush1.msra.mxu0 %v72
    %141 = vmatprep.subr.mxu0 0.0
    %142 = vmatpush1.msra.mxu0 %v73
    %143 = vmatprep.subr.mxu0 0.0
    %144 = vmatpush1.msra.mxu0 %v74
    %145 = vmatprep.subr.mxu0 0.0
    %146 = vmatpush1.msra.mxu0 %v75
    %147 = vmatprep.subr.mxu0 0.0
    %148 = vmatpush1.msra.mxu0 %v76
    %149 = vmatprep.subr.mxu0 0.0
    %150 = vmatpush1.msra.mxu0 %v77
    %151 = vmatprep.subr.mxu0 0.0
    %152 = vmatpush1.msra.mxu0 %v78
    %153 = vmatprep.subr.mxu0 0.0
    %154 = vmatpush1.msra.mxu0 %v79
    %155 = vmatprep.subr.mxu0 0.0
    %156 = vmatpush1.msra.mxu0 %v80
    %157 = vmatprep.subr.mxu0 0.0
    %158 = vmatpush1.msra.mxu0 %v81
    %159 = vmatprep.subr.mxu0 0.0
    %160 = vmatpush1.msra.mxu0 %v82
    %161 = vmatprep.subr.mxu0 0.0
    %162 = vmatpush1.msra.mxu0 %v83
    %163 = vmatprep.subr.mxu0 0.0
    %164 = vmatpush1.msra.mxu0 %v84
    %165 = vmatprep.subr.mxu0 0.0
    %166 = vmatpush1.msra.mxu0 %v85
    %167 = vmatprep.subr.mxu0 0.0
    %168 = vmatpush1.msra.mxu0 %v86
    %169 = vmatprep.subr.mxu0 0.0
    %170 = vmatpush1.msra.mxu0 %v87
    %171 = vmatprep.subr.mxu0 0.0
    %172 = vmatpush1.msra.mxu0 %v88
    %173 = vmatprep.subr.mxu0 0.0
    %174 = vmatpush1.msra.mxu0 %v89
    %175 = vmatprep.subr.mxu0 0.0
    %176 = vmatpush1.msra.mxu0 %v90
    %177 = vmatprep.subr.mxu0 0.0
    %178 = vmatpush1.msra.mxu0 %v91
    %179 = vmatprep.subr.mxu0 0.0
    %180 = vmatpush1.msra.mxu0 %v92
    %181 = vmatprep.subr.mxu0 0.0
    %182 = vmatpush1.msra.mxu0 %v93
    %183 = vmatprep.subr.mxu0 0.0
    %184 = vmatpush1.msra.mxu0 %v94
    %185 = vmatprep.subr.mxu0 0.0
    %186 = vmatpush1.msra.mxu0 %v95
    %187 = vmatprep.subr.mxu0 0.0
    %188 = vmatpush1.msra.mxu0 %v96
    %189 = vmatprep.subr.mxu0 0.0
    %190 = vmatpush1.msra.mxu0 %v97
    %191 = vmatprep.subr.mxu0 0.0
    %192 = vmatpush1.msra.mxu0 %v98
    %193 = vmatprep.subr.mxu0 0.0
    %194 = vmatpush1.msra.mxu0 %v99
    %195 = vmatprep.subr.mxu0 0.0
    %196 = vmatpush1.msra.mxu0 %v100
    %197 = vmatprep.mubr.f32.mxu0 %v62
    %198 = vmatmul.mubr.f32.gmra.mrb[0].mxu0 %v61
    %v199 = vpop.f32.mrb[0].mxu0
    %v200 = vadd.f32 0.0, %v199
    %v201 = vpop.f32.mrb[0].mxu0
    %202 = vmatprep.mubr.f32.mxu0 %v66
    %203 = vmatmul.mubr.f32.gmra.mrb[0].mxu0 %v65
    %v204 = vpop.f32.mrb[0].mxu0
    %v205 = vadd.f32 0.0, %v204
    %v206 = vpop.f32.mrb[0].mxu0
    %207 = vdwg.mxu0
    %208 = vmatprep.subr.mxu0 0.0
    %209 = vmatpush1.msra.mxu0 %v101
    %210 = vmatprep.subr.mxu0 0.0
    %211 = vmatpush1.msra.mxu0 %v102
    %212 = vmatprep.subr.mxu0 0.0
    %213 = vmatpush1.msra.mxu0 %v103
    %214 = vmatprep.subr.mxu0 0.0
    %215 = vmatpush1.msra.mxu0 %v104
    %216 = vmatprep.subr.mxu0 0.0
    %217 = vmatpush1.msra.mxu0 %v105
    %218 = vmatprep.subr.mxu0 0.0
    %219 = vmatpush1.msra.mxu0 %v106
    %220 = vmatprep.subr.mxu0 0.0
    %221 = vmatpush1.msra.mxu0 %v107
    %222 = vmatprep.subr.mxu0 0.0
    %223 = vmatpush1.msra.mxu0 %v108
    %224 = vmatprep.subr.mxu0 0.0
    %225 = vmatpush1.msra.mxu0 %v109
    %226 = vmatprep.subr.mxu0 0.0
    %227 = vmatpush1.msra.mxu0 %v110
    %228 = vmatprep.subr.mxu0 0.0
    %229 = vmatpush1.msra.mxu0 %v111
    %230 = vmatprep.subr.mxu0 0.0
    %231 = vmatpush1.msra.mxu0 %v112
    %232 = vmatprep.subr.mxu0 0.0
    %233 = vmatpush1.msra.mxu0 %v113
    %234 = vmatprep.subr.mxu0 0.0
    %235 = vmatpush1.msra.mxu0 %v114
    %236 = vmatprep.subr.mxu0 0.0
    %237 = vmatpush1.msra.mxu0 %v115
    %238 = vmatprep.subr.mxu0 0.0
    %239 = vmatpush1.msra.mxu0 %v116
    %240 = vmatprep.subr.mxu0 0.0
    %241 = vmatpush1.msra.mxu0 %v117
    %242 = vmatprep.subr.mxu0 0.0
    %243 = vmatpush1.msra.mxu0 %v118
    %244 = vmatprep.subr.mxu0 0.0
    %245 = vmatpush1.msra.mxu0 %v119
    %246 = vmatprep.subr.mxu0 0.0
    %247 = vmatpush1.msra.mxu0 %v120
    %248 = vmatprep.subr.mxu0 0.0
    %249 = vmatpush1.msra.mxu0 %v121
    %250 = vmatprep.subr.mxu0 0.0
    %251 = vmatpush1.msra.mxu0 %v122
    %252 = vmatprep.subr.mxu0 0.0
    %253 = vmatpush1.msra.mxu0 %v123
    %254 = vmatprep.subr.mxu0 0.0
    %255 = vmatpush1.msra.mxu0 %v124
    %256 = vmatprep.subr.mxu0 0.0
    %257 = vmatpush1.msra.mxu0 %v125
    %258 = vmatprep.subr.mxu0 0.0
    %259 = vmatpush1.msra.mxu0 %v126
    %260 = vmatprep.subr.mxu0 0.0
    %261 = vmatpush1.msra.mxu0 %v127
    %262 = vmatprep.subr.mxu0 0.0
    %263 = vmatpush1.msra.mxu0 %v128
    %264 = vmatprep.subr.mxu0 0.0
    %265 = vmatpush1.msra.mxu0 %v129
    %266 = vmatprep.subr.mxu0 0.0
    %267 = vmatpush1.msra.mxu0 %v130
    %268 = vmatprep.subr.mxu0 0.0
    %269 = vmatpush1.msra.mxu0 %v131
    %270 = vmatprep.subr.mxu0 0.0
    %271 = vmatpush1.msra.mxu0 %v132
    %272 = vmatprep.mubr.f32.mxu0 %v64
    %273 = vmatmul.mubr.f32.gmra.mrb[0].mxu0 %v63
    %v274 = vpop.f32.mrb[0].mxu0
    %v275 = vadd.f32 %v200, %v274
    %v276 = vpop.f32.mrb[0].mxu0
    %277 = vmatprep.mubr.f32.mxu0 %v68
    %278 = vmatmul.mubr.f32.gmra.mrb[0].mxu0 %v67
    %v279 = vpop.f32.mrb[0].mxu0
    %v280 = vadd.f32 %v205, %v279
    %v281 = vpop.f32.mrb[0].mxu0
    %282 = vdwg.mxu0
    %v283 = vadd.f32 %v275, %v280
    %v284 = vrot.slane %v283, 4
    %v285 = vadd.f32 %v283, %v284
    %v286 = vrot.slane %v285, 2
    %v287 = vadd.f32 %v285, %v286
    %v288 = vrot.slane %v287, 1
    %v289 = vadd.f32 %v287, %v288
    %v290 = vld [vmem:[%s6] sm:$0xff]
    %v291 = vld [vmem:[%s6 + $0x8] sm:$0xff]
    %v292 = vld [vmem:[%s6 + $0x10] sm:$0xff]
    %v293 = vld [vmem:[%s6 + $0x18] sm:$0xff]
    %v294 = vld [vmem:[%s6 + $0x20] sm:$0xff]
    %v295 = vld [vmem:[%s6 + $0x28] sm:$0xff]
    %v296 = vld [vmem:[%s6 + $0x30] sm:$0xff]
    %v297 = vld [vmem:[%s6 + $0x38] sm:$0xff]
    %v298 = vld [vmem:[%s6 + $0x40] sm:$0xff]
    %v299 = vld [vmem:[%s6 + $0x48] sm:$0xff]
    %v300 = vld [vmem:[%s6 + $0x50] sm:$0xff]
    %v301 = vld [vmem:[%s6 + $0x58] sm:$0xff]
    %v302 = vld [vmem:[%s6 + $0x60] sm:$0xff]
    %v303 = vld [vmem:[%s6 + $0x68] sm:$0xff]
    %v304 = vld [vmem:[%s6 + $0x70] sm:$0xff]
    %v305 = vld [vmem:[%s6 + $0x78] sm:$0xff]
    %306 = vmatprep.subr.mxu0 0.0
    %307 = vmatpush1.msra.mxu0 %v290
    %308 = vmatprep.subr.mxu0 0.0
    %309 = vmatpush1.msra.mxu0 %v291
    %310 = vmatprep.subr.mxu0 0.0
    %311 = vmatpush1.msra.mxu0 %v292
    %312 = vmatprep.subr.mxu0 0.0
    %313 = vmatpush1.msra.mxu0 %v293
    %314 = vmatprep.subr.mxu0 0.0
    %315 = vmatpush1.msra.mxu0 %v294
    %316 = vmatprep.subr.mxu0 0.0
    %317 = vmatpush1.msra.mxu0 %v295
    %318 = vmatprep.subr.mxu0 0.0
    %319 = vmatpush1.msra.mxu0 %v296
    %320 = vmatprep.subr.mxu0 0.0
    %321 = vmatpush1.msra.mxu0 %v297
    %322 = vmatprep.subr.mxu0 0.0
    %323 = vmatpush1.msra.mxu0 %v298
    %324 = vmatprep.subr.mxu0 0.0
    %325 = vmatpush1.msra.mxu0 %v299
    %326 = vmatprep.subr.mxu0 0.0
    %327 = vmatpush1.msra.mxu0 %v300
    %328 = vmatprep.subr.mxu0 0.0
    %329 = vmatpush1.msra.mxu0 %v301
    %330 = vmatprep.subr.mxu0 0.0
    %331 = vmatpush1.msra.mxu0 %v302
    %332 = vmatprep.subr.mxu0 0.0
    %333 = vmatpush1.msra.mxu0 %v303
    %334 = vmatprep.subr.mxu0 0.0
    %335 = vmatpush1.msra.mxu0 %v304
    %336 = vmatprep.subr.mxu0 0.0
    %337 = vmatpush1.msra.mxu0 %v305
    %338 = vmatprep.subr.mxu0 0.0
    %339 = vmatpush1.msra.mxu0 0.0
    %340 = vmatprep.subr.mxu0 0.0
    %341 = vmatpush1.msra.mxu0 0.0
    %342 = vmatprep.subr.mxu0 0.0
    %343 = vmatpush1.msra.mxu0 0.0
    %344 = vmatprep.subr.mxu0 0.0
    %345 = vmatpush1.msra.mxu0 0.0
    %346 = vmatprep.subr.mxu0 0.0
    %347 = vmatpush1.msra.mxu0 0.0
    %348 = vmatprep.subr.mxu0 0.0
    %349 = vmatpush1.msra.mxu0 0.0
    %350 = vmatprep.subr.mxu0 0.0
    %351 = vmatpush1.msra.mxu0 0.0
    %352 = vmatprep.subr.mxu0 0.0
    %353 = vmatpush1.msra.mxu0 0.0
    %354 = vmatprep.subr.mxu0 0.0
    %355 = vmatpush1.msra.mxu0 0.0
    %356 = vmatprep.subr.mxu0 0.0
    %357 = vmatpush1.msra.mxu0 0.0
    %358 = vmatprep.subr.mxu0 0.0
    %359 = vmatpush1.msra.mxu0 0.0
    %360 = vmatprep.subr.mxu0 0.0
    %361 = vmatpush1.msra.mxu0 0.0
    %362 = vmatprep.subr.mxu0 0.0
    %363 = vmatpush1.msra.mxu0 0.0
    %364 = vmatprep.subr.mxu0 0.0
    %365 = vmatpush1.msra.mxu0 0.0
    %366 = vmatprep.subr.mxu0 0.0
    %367 = vmatpush1.msra.mxu0 0.0
    %368 = vmatprep.subr.mxu0 0.0
    %369 = vmatpush1.msra.mxu0 0.0
    %370 = vmatprep.mubr.f32.mxu0 0.0
    %371 = vmatmul.mubr.f32.gmra.mrb[0].mxu0 %v289
    %v372 = vpop.f32.mrb[0].mxu0
    %v373 = vadd.f32 0.0, %v372
    %v374 = vpop.f32.mrb[0].mxu0
    %375 = vdwg.mxu0
    %v376 = vlaneseq
    %v377 = vshrl.u32 %v376, 7
    %v378 = vsub.s32 0, %v377
    %v379 = vrot.slane %v373, %v378
    %v380 = vsub.f32 %v275, %v379
    %v381 = vsub.f32 %v280, %v379
    %v382 = vmul.f32 %v380, %v380
    %v383 = vmul.f32 %v381, %v381
    %v384 = vadd.f32 %v382, %v383
    %v385 = vrot.slane %v384, 4
    %v386 = vadd.f32 %v384, %v385
    %v387 = vrot.slane %v386, 2
    %v388 = vadd.f32 %v386, %v387
    %v389 = vrot.slane %v388, 1
    %v390 = vadd.f32 %v388, %v389
    %391 = vmatprep.subr.mxu0 0.0
    %392 = vmatpush1.msra.mxu0 %v290
    %393 = vmatprep.subr.mxu0 0.0
    %394 = vmatpush1.msra.mxu0 %v291
    %395 = vmatprep.subr.mxu0 0.0
    %396 = vmatpush1.msra.mxu0 %v292
    %397 = vmatprep.subr.mxu0 0.0
    %398 = vmatpush1.msra.mxu0 %v293
    %399 = vmatprep.subr.mxu0 0.0
    %400 = vmatpush1.msra.mxu0 %v294
    %401 = vmatprep.subr.mxu0 0.0
    %402 = vmatpush1.msra.mxu0 %v295
    %403 = vmatprep.subr.mxu0 0.0
    %404 = vmatpush1.msra.mxu0 %v296
    %405 = vmatprep.subr.mxu0 0.0
    %406 = vmatpush1.msra.mxu0 %v297
    %407 = vmatprep.subr.mxu0 0.0
    %408 = vmatpush1.msra.mxu0 %v298
    %409 = vmatprep.subr.mxu0 0.0
    %410 = vmatpush1.msra.mxu0 %v299
    %411 = vmatprep.subr.mxu0 0.0
    %412 = vmatpush1.msra.mxu0 %v300
    %413 = vmatprep.subr.mxu0 0.0
    %414 = vmatpush1.msra.mxu0 %v301
    %415 = vmatprep.subr.mxu0 0.0
    %416 = vmatpush1.msra.mxu0 %v302
    %417 = vmatprep.subr.mxu0 0.0
    %418 = vmatpush1.msra.mxu0 %v303
    %419 = vmatprep.subr.mxu0 0.0
    %420 = vmatpush1.msra.mxu0 %v304
    %421 = vmatprep.subr.mxu0 0.0
    %422 = vmatpush1.msra.mxu0 %v305
    %423 = vmatprep.subr.mxu0 0.0
    %424 = vmatpush1.msra.mxu0 0.0
    %425 = vmatprep.subr.mxu0 0.0
    %426 = vmatpush1.msra.mxu0 0.0
    %427 = vmatprep.subr.mxu0 0.0
    %428 = vmatpush1.msra.mxu0 0.0
    %429 = vmatprep.subr.mxu0 0.0
    %430 = vmatpush1.msra.mxu0 0.0
    %431 = vmatprep.subr.mxu0 0.0
    %432 = vmatpush1.msra.mxu0 0.0
    %433 = vmatprep.subr.mxu0 0.0
    %434 = vmatpush1.msra.mxu0 0.0
    %435 = vmatprep.subr.mxu0 0.0
    %436 = vmatpush1.msra.mxu0 0.0
    %437 = vmatprep.subr.mxu0 0.0
    %438 = vmatpush1.msra.mxu0 0.0
    %439 = vmatprep.subr.mxu0 0.0
    %440 = vmatpush1.msra.mxu0 0.0
    %441 = vmatprep.subr.mxu0 0.0
    %442 = vmatpush1.msra.mxu0 0.0
    %443 = vmatprep.subr.mxu0 0.0
    %444 = vmatpush1.msra.mxu0 0.0
    %445 = vmatprep.subr.mxu0 0.0
    %446 = vmatpush1.msra.mxu0 0.0
    %447 = vmatprep.subr.mxu0 0.0
    %448 = vmatpush1.msra.mxu0 0.0
    %449 = vmatprep.subr.mxu0 0.0
    %450 = vmatpush1.msra.mxu0 0.0
    %451 = vmatprep.subr.mxu0 0.0
    %452 = vmatpush1.msra.mxu0 0.0
    %453 = vmatprep.subr.mxu0 0.0
    %454 = vmatpush1.msra.mxu0 0.0
    %455 = vmatprep.mubr.f32.mxu0 0.0
    %456 = vmatmul.mubr.f32.gmra.mrb[0].mxu0 %v390
    %v457 = vpop.f32.mrb[0].mxu0
    %v458 = vadd.f32 1e-05, %v457
    %v459 = vpop.f32.mrb[0].mxu0
    %460 = vdwg.mxu0
    %v461 = vrsqrt.pop %v458
    %v462 = vlaneseq
    %v463 = vshrl.u32 %v462, 7
    %v464 = vsub.s32 0, %v463
    %v465 = vrot.slane %v461, %v464
    %v466 = vmul.f32 %v380, %v465
    %v467 = vmul.f32 %v381, %v465
    %v468 = vld [vmem:[%s8] sm:$0x1]
    %v470 = vlaneseq
    %v471 = vshrl.u32 %v470, 7
    %v472 = vsub.s32 0, %v471
    %v473 = vrot.slane %v468, %v472
    %v475 = vmul.f32 %v466, %v473
    %v476 = vmul.f32 %v467, %v473
    %v477 = vld [vmem:[%s9] sm:$0x1]
    %v479 = vlaneseq
    %v480 = vshrl.u32 %v479, 7
    %v481 = vsub.s32 0, %v480
    %v482 = vrot.slane %v477, %v481
    %v484 = vadd.f32 %v475, %v482
    %v485 = vadd.f32 %v476, %v482
    %v486 = vmax.f32 %v484, 0.0
    %v487 = vmax.f32 %v485, 0.0
    %v488 = vld [vmem:[%s4] sm:$0xff]
    %v489 = vld [vmem:[%s4 + $0x8] sm:$0xff]
    %vm490 = vcmask 130048
    %v492 = vsel %vm490, %v488, 0
    %v495 = vsel %vm490, %v489, 0
    %497 = vmatprep.subr.mxu0 0.0
    %498 = vmatpush1.msra.mxu0 %v486
    %499 = vmatprep.subr.mxu0 0.0
    %500 = vmatpush1.msra.mxu0 %v487
    %501 = vmatprep.subr.mxu0 0.0
    %502 = vmatpush1.msra.mxu0 0.0
    %503 = vmatprep.subr.mxu0 0.0
    %504 = vmatpush1.msra.mxu0 0.0
    %505 = vmatprep.subr.mxu0 0.0
    %506 = vmatpush1.msra.mxu0 0.0
    %507 = vmatprep.subr.mxu0 0.0
    %508 = vmatpush1.msra.mxu0 0.0
    %509 = vmatprep.subr.mxu0 0.0
    %510 = vmatpush1.msra.mxu0 0.0
    %511 = vmatprep.subr.mxu0 0.0
    %512 = vmatpush1.msra.mxu0 0.0
    %513 = vmatprep.subr.mxu0 0.0
    %514 = vmatpush1.msra.mxu0 0.0
    %515 = vmatprep.subr.mxu0 0.0
    %516 = vmatpush1.msra.mxu0 0.0
    %517 = vmatprep.subr.mxu0 0.0
    %518 = vmatpush1.msra.mxu0 0.0
    %519 = vmatprep.subr.mxu0 0.0
    %520 = vmatpush1.msra.mxu0 0.0
    %521 = vmatprep.subr.mxu0 0.0
    %522 = vmatpush1.msra.mxu0 0.0
    %523 = vmatprep.subr.mxu0 0.0
    %524 = vmatpush1.msra.mxu0 0.0
    %525 = vmatprep.subr.mxu0 0.0
    %526 = vmatpush1.msra.mxu0 0.0
    %527 = vmatprep.subr.mxu0 0.0
    %528 = vmatpush1.msra.mxu0 0.0
    %529 = vmatprep.subr.mxu0 0.0
    %530 = vmatpush1.msra.mxu0 0.0
    %531 = vmatprep.subr.mxu0 0.0
    %532 = vmatpush1.msra.mxu0 0.0
    %533 = vmatprep.subr.mxu0 0.0
    %534 = vmatpush1.msra.mxu0 0.0
    %535 = vmatprep.subr.mxu0 0.0
    %536 = vmatpush1.msra.mxu0 0.0
    %537 = vmatprep.subr.mxu0 0.0
    %538 = vmatpush1.msra.mxu0 0.0
    %539 = vmatprep.subr.mxu0 0.0
    %540 = vmatpush1.msra.mxu0 0.0
    %541 = vmatprep.subr.mxu0 0.0
    %542 = vmatpush1.msra.mxu0 0.0
    %543 = vmatprep.subr.mxu0 0.0
    %544 = vmatpush1.msra.mxu0 0.0
    %545 = vmatprep.subr.mxu0 0.0
    %546 = vmatpush1.msra.mxu0 0.0
    %547 = vmatprep.subr.mxu0 0.0
    %548 = vmatpush1.msra.mxu0 0.0
    %549 = vmatprep.subr.mxu0 0.0
    %550 = vmatpush1.msra.mxu0 0.0
    %551 = vmatprep.subr.mxu0 0.0
    %552 = vmatpush1.msra.mxu0 0.0
    %553 = vmatprep.subr.mxu0 0.0
    %554 = vmatpush1.msra.mxu0 0.0
    %555 = vmatprep.subr.mxu0 0.0
    %556 = vmatpush1.msra.mxu0 0.0
    %557 = vmatprep.subr.mxu0 0.0
    %558 = vmatpush1.msra.mxu0 0.0
    %559 = vmatprep.subr.mxu0 0.0
    %560 = vmatpush1.msra.mxu0 0.0
    %561 = vmatprep.mubr.f32.mxu0 0.0
    %562 = vmatmul.mubr.f32.gmra.mrb[0].mxu0 %v492
    %v563 = vpop.f32.mrb[0].mxu0
    %v564 = vadd.f32 0.0, %v563
    %v565 = vpop.f32.mrb[0].mxu0
    %566 = vmatprep.mubr.f32.mxu0 0.0
    %567 = vmatmul.mubr.f32.gmra.mrb[0].mxu0 %v495
    %v568 = vpop.f32.mrb[0].mxu0
    %v569 = vadd.f32 0.0, %v568
    %v570 = vpop.f32.mrb[0].mxu0
    %571 = vdwg.mxu0
    %v572 = vld [vmem:[%s5] sm:$0xff]
    %v573 = vld [vmem:[%s5 + $0x8] sm:$0xff]
    %v575 = vsel %vm490, %v572, 0
    %v578 = vsel %vm490, %v573, 0
    %580 = vmatprep.subr.mxu0 0.0
    %581 = vmatpush1.msra.mxu0 %v486
    %582 = vmatprep.subr.mxu0 0.0
    %583 = vmatpush1.msra.mxu0 %v487
    %584 = vmatprep.subr.mxu0 0.0
    %585 = vmatpush1.msra.mxu0 0.0
    %586 = vmatprep.subr.mxu0 0.0
    %587 = vmatpush1.msra.mxu0 0.0
    %588 = vmatprep.subr.mxu0 0.0
    %589 = vmatpush1.msra.mxu0 0.0
    %590 = vmatprep.subr.mxu0 0.0
    %591 = vmatpush1.msra.mxu0 0.0
    %592 = vmatprep.subr.mxu0 0.0
    %593 = vmatpush1.msra.mxu0 0.0
    %594 = vmatprep.subr.mxu0 0.0
    %595 = vmatpush1.msra.mxu0 0.0
    %596 = vmatprep.subr.mxu0 0.0
    %597 = vmatpush1.msra.mxu0 0.0
    %598 = vmatprep.subr.mxu0 0.0
    %599 = vmatpush1.msra.mxu0 0.0
    %600 = vmatprep.subr.mxu0 0.0
    %601 = vmatpush1.msra.mxu0 0.0
    %602 = vmatprep.subr.mxu0 0.0
    %603 = vmatpush1.msra.mxu0 0.0
    %604 = vmatprep.subr.mxu0 0.0
    %605 = vmatpush1.msra.mxu0 0.0
    %606 = vmatprep.subr.mxu0 0.0
    %607 = vmatpush1.msra.mxu0 0.0
    %608 = vmatprep.subr.mxu0 0.0
    %609 = vmatpush1.msra.mxu0 0.0
    %610 = vmatprep.subr.mxu0 0.0
    %611 = vmatpush1.msra.mxu0 0.0
    %612 = vmatprep.subr.mxu0 0.0
    %613 = vmatpush1.msra.mxu0 0.0
    %614 = vmatprep.subr.mxu0 0.0
    %615 = vmatpush1.msra.mxu0 0.0
    %616 = vmatprep.subr.mxu0 0.0
    %617 = vmatpush1.msra.mxu0 0.0
    %618 = vmatprep.subr.mxu0 0.0
    %619 = vmatpush1.msra.mxu0 0.0
    %620 = vmatprep.subr.mxu0 0.0
    %621 = vmatpush1.msra.mxu0 0.0
    %622 = vmatprep.subr.mxu0 0.0
    %623 = vmatpush1.msra.mxu0 0.0
    %624 = vmatprep.subr.mxu0 0.0
    %625 = vmatpush1.msra.mxu0 0.0
    %626 = vmatprep.subr.mxu0 0.0
    %627 = vmatpush1.msra.mxu0 0.0
    %628 = vmatprep.subr.mxu0 0.0
    %629 = vmatpush1.msra.mxu0 0.0
    %630 = vmatprep.subr.mxu0 0.0
    %631 = vmatpush1.msra.mxu0 0.0
    %632 = vmatprep.subr.mxu0 0.0
    %633 = vmatpush1.msra.mxu0 0.0
    %634 = vmatprep.subr.mxu0 0.0
    %635 = vmatpush1.msra.mxu0 0.0
    %636 = vmatprep.subr.mxu0 0.0
    %637 = vmatpush1.msra.mxu0 0.0
    %638 = vmatprep.subr.mxu0 0.0
    %639 = vmatpush1.msra.mxu0 0.0
    %640 = vmatprep.subr.mxu0 0.0
    %641 = vmatpush1.msra.mxu0 0.0
    %642 = vmatprep.subr.mxu0 0.0
    %643 = vmatpush1.msra.mxu0 0.0
    %644 = vmatprep.mubr.f32.mxu0 0.0
    %645 = vmatmul.mubr.f32.gmra.mrb[0].mxu0 %v575
    %v646 = vpop.f32.mrb[0].mxu0
    %v647 = vadd.f32 0.0, %v646
    %v648 = vpop.f32.mrb[0].mxu0
    %649 = vmatprep.mubr.f32.mxu0 0.0
    %650 = vmatmul.mubr.f32.gmra.mrb[0].mxu0 %v578
    %v651 = vpop.f32.mrb[0].mxu0
    %v652 = vadd.f32 0.0, %v651
    %v653 = vpop.f32.mrb[0].mxu0
    %654 = vdwg.mxu0
    %v655 = vld [vmem:[%s2] sm:$0xff]
    %v656 = vld [vmem:[%s2 + $0x8] sm:$0xff]
    %v657 = vld [vmem:[%s2 + $0x10] sm:$0xff]
    %v658 = vld [vmem:[%s2 + $0x18] sm:$0xff]
    %v659 = vld [vmem:[%s2 + $0x20] sm:$0xff]
    %v660 = vld [vmem:[%s2 + $0x28] sm:$0xff]
    %v661 = vld [vmem:[%s2 + $0x30] sm:$0xff]
    %v662 = vld [vmem:[%s2 + $0x38] sm:$0xff]
    %v663 = vld [vmem:[%s2 + $0x40] sm:$0xff]
    %v664 = vld [vmem:[%s2 + $0x48] sm:$0xff]
    %v665 = vld [vmem:[%s2 + $0x50] sm:$0xff]
    %v666 = vld [vmem:[%s2 + $0x58] sm:$0xff]
    %v667 = vld [vmem:[%s2 + $0x60] sm:$0xff]
    %v668 = vld [vmem:[%s2 + $0x68] sm:$0xff]
    %v669 = vld [vmem:[%s2 + $0x70] sm:$0xff]
    %v670 = vld [vmem:[%s2 + $0x78] sm:$0xff]
    %v671 = vld [vmem:[%s2 + $0x80] sm:$0xff]
    %v672 = vld [vmem:[%s2 + $0x88] sm:$0xff]
    %v673 = vld [vmem:[%s2 + $0x90] sm:$0xff]
    %v674 = vld [vmem:[%s2 + $0x98] sm:$0xff]
    %v675 = vld [vmem:[%s2 + $0xa0] sm:$0xff]
    %v676 = vld [vmem:[%s2 + $0xa8] sm:$0xff]
    %v677 = vld [vmem:[%s2 + $0xb0] sm:$0xff]
    %v678 = vld [vmem:[%s2 + $0xb8] sm:$0xff]
    %v679 = vld [vmem:[%s2 + $0xc0] sm:$0xff]
    %v680 = vld [vmem:[%s2 + $0xc8] sm:$0xff]
    %v681 = vld [vmem:[%s2 + $0xd0] sm:$0xff]
    %v682 = vld [vmem:[%s2 + $0xd8] sm:$0xff]
    %v683 = vld [vmem:[%s2 + $0xe0] sm:$0xff]
    %v684 = vld [vmem:[%s2 + $0xe8] sm:$0xff]
    %v685 = vld [vmem:[%s2 + $0xf0] sm:$0xff]
    %v686 = vld [vmem:[%s2 + $0xf8] sm:$0xff]
    %v687 = vld [vmem:[%s2 + $0x100] sm:$0xff]
    %v688 = vld [vmem:[%s2 + $0x108] sm:$0xff]
    %v689 = vld [vmem:[%s2 + $0x110] sm:$0xff]
    %v690 = vld [vmem:[%s2 + $0x118] sm:$0xff]
    %v691 = vld [vmem:[%s2 + $0x120] sm:$0xff]
    %v692 = vld [vmem:[%s2 + $0x128] sm:$0xff]
    %v693 = vld [vmem:[%s2 + $0x130] sm:$0xff]
    %v694 = vld [vmem:[%s2 + $0x138] sm:$0xff]
    %v695 = vld [vmem:[%s2 + $0x140] sm:$0xff]
    %v696 = vld [vmem:[%s2 + $0x148] sm:$0xff]
    %v697 = vld [vmem:[%s2 + $0x150] sm:$0xff]
    %v698 = vld [vmem:[%s2 + $0x158] sm:$0xff]
    %v699 = vld [vmem:[%s2 + $0x160] sm:$0xff]
    %v700 = vld [vmem:[%s2 + $0x168] sm:$0xff]
    %v701 = vld [vmem:[%s2 + $0x170] sm:$0xff]
    %v702 = vld [vmem:[%s2 + $0x178] sm:$0xff]
    %703 = vmatprep.subr.mxu0 0.0
    %704 = vmatpush1.msra.mxu0 %v655
    %705 = vmatprep.subr.mxu0 0.0
    %706 = vmatpush1.msra.mxu0 %v656
    %707 = vmatprep.subr.mxu0 0.0
    %708 = vmatpush1.msra.mxu0 %v657
    %709 = vmatprep.subr.mxu0 0.0
    %710 = vmatpush1.msra.mxu0 %v658
    %711 = vmatprep.subr.mxu0 0.0
    %712 = vmatpush1.msra.mxu0 %v659
    %713 = vmatprep.subr.mxu0 0.0
    %714 = vmatpush1.msra.mxu0 %v660
    %715 = vmatprep.subr.mxu0 0.0
    %716 = vmatpush1.msra.mxu0 %v661
    %717 = vmatprep.subr.mxu0 0.0
    %718 = vmatpush1.msra.mxu0 %v662
    %719 = vmatprep.subr.mxu0 0.0
    %720 = vmatpush1.msra.mxu0 %v663
    %721 = vmatprep.subr.mxu0 0.0
    %722 = vmatpush1.msra.mxu0 %v664
    %723 = vmatprep.subr.mxu0 0.0
    %724 = vmatpush1.msra.mxu0 %v665
    %725 = vmatprep.subr.mxu0 0.0
    %726 = vmatpush1.msra.mxu0 %v666
    %727 = vmatprep.subr.mxu0 0.0
    %728 = vmatpush1.msra.mxu0 %v667
    %729 = vmatprep.subr.mxu0 0.0
    %730 = vmatpush1.msra.mxu0 %v668
    %731 = vmatprep.subr.mxu0 0.0
    %732 = vmatpush1.msra.mxu0 %v669
    %733 = vmatprep.subr.mxu0 0.0
    %734 = vmatpush1.msra.mxu0 %v670
    %735 = vmatprep.subr.mxu0 0.0
    %736 = vmatpush1.msra.mxu0 %v671
    %737 = vmatprep.subr.mxu0 0.0
    %738 = vmatpush1.msra.mxu0 %v672
    %739 = vmatprep.subr.mxu0 0.0
    %740 = vmatpush1.msra.mxu0 %v673
    %741 = vmatprep.subr.mxu0 0.0
    %742 = vmatpush1.msra.mxu0 %v674
    %743 = vmatprep.subr.mxu0 0.0
    %744 = vmatpush1.msra.mxu0 %v675
    %745 = vmatprep.subr.mxu0 0.0
    %746 = vmatpush1.msra.mxu0 %v676
    %747 = vmatprep.subr.mxu0 0.0
    %748 = vmatpush1.msra.mxu0 %v677
    %749 = vmatprep.subr.mxu0 0.0
    %750 = vmatpush1.msra.mxu0 %v678
    %751 = vmatprep.subr.mxu0 0.0
    %752 = vmatpush1.msra.mxu0 %v679
    %753 = vmatprep.subr.mxu0 0.0
    %754 = vmatpush1.msra.mxu0 %v680
    %755 = vmatprep.subr.mxu0 0.0
    %756 = vmatpush1.msra.mxu0 %v681
    %757 = vmatprep.subr.mxu0 0.0
    %758 = vmatpush1.msra.mxu0 %v682
    %759 = vmatprep.subr.mxu0 0.0
    %760 = vmatpush1.msra.mxu0 %v683
    %761 = vmatprep.subr.mxu0 0.0
    %762 = vmatpush1.msra.mxu0 %v684
    %763 = vmatprep.subr.mxu0 0.0
    %764 = vmatpush1.msra.mxu0 %v685
    %765 = vmatprep.subr.mxu0 0.0
    %766 = vmatpush1.msra.mxu0 %v686
    %767 = vmatprep.mubr.f32.mxu0 %v486
    %768 = vmatmul.mubr.f32.gmra.mrb[0].mxu0 %v564
    %v769 = vpop.f32.mrb[0].mxu0
    %v770 = vadd.f32 0.0, %v769
    %v771 = vpop.f32.mrb[0].mxu0
    %772 = vmatprep.mubr.f32.mxu0 %v487
    %773 = vmatmul.mubr.f32.gmra.mrb[0].mxu0 %v569
    %v774 = vpop.f32.mrb[0].mxu0
    %v775 = vadd.f32 0.0, %v774
    %v776 = vpop.f32.mrb[0].mxu0
    %777 = vdwg.mxu0
    %778 = vmatprep.subr.mxu0 0.0
    %779 = vmatpush1.msra.mxu0 %v687
    %780 = vmatprep.subr.mxu0 0.0
    %781 = vmatpush1.msra.mxu0 %v688
    %782 = vmatprep.subr.mxu0 0.0
    %783 = vmatpush1.msra.mxu0 %v689
    %784 = vmatprep.subr.mxu0 0.0
    %785 = vmatpush1.msra.mxu0 %v690
    %786 = vmatprep.subr.mxu0 0.0
    %787 = vmatpush1.msra.mxu0 %v691
    %788 = vmatprep.subr.mxu0 0.0
    %789 = vmatpush1.msra.mxu0 %v692
    %790 = vmatprep.subr.mxu0 0.0
    %791 = vmatpush1.msra.mxu0 %v693
    %792 = vmatprep.subr.mxu0 0.0
    %793 = vmatpush1.msra.mxu0 %v694
    %794 = vmatprep.subr.mxu0 0.0
    %795 = vmatpush1.msra.mxu0 %v695
    %796 = vmatprep.subr.mxu0 0.0
    %797 = vmatpush1.msra.mxu0 %v696
    %798 = vmatprep.subr.mxu0 0.0
    %799 = vmatpush1.msra.mxu0 %v697
    %800 = vmatprep.subr.mxu0 0.0
    %801 = vmatpush1.msra.mxu0 %v698
    %802 = vmatprep.subr.mxu0 0.0
    %803 = vmatpush1.msra.mxu0 %v699
    %804 = vmatprep.subr.mxu0 0.0
    %805 = vmatpush1.msra.mxu0 %v700
    %806 = vmatprep.subr.mxu0 0.0
    %807 = vmatpush1.msra.mxu0 %v701
    %808 = vmatprep.subr.mxu0 0.0
    %809 = vmatpush1.msra.mxu0 %v702
    %810 = vmatprep.subr.mxu0 0.0
    %811 = vmatpush1.msra.mxu0 0.0
    %812 = vmatprep.subr.mxu0 0.0
    %813 = vmatpush1.msra.mxu0 0.0
    %814 = vmatprep.subr.mxu0 0.0
    %815 = vmatpush1.msra.mxu0 0.0
    %816 = vmatprep.subr.mxu0 0.0
    %817 = vmatpush1.msra.mxu0 0.0
    %818 = vmatprep.subr.mxu0 0.0
    %819 = vmatpush1.msra.mxu0 0.0
    %820 = vmatprep.subr.mxu0 0.0
    %821 = vmatpush1.msra.mxu0 0.0
    %822 = vmatprep.subr.mxu0 0.0
    %823 = vmatpush1.msra.mxu0 0.0
    %824 = vmatprep.subr.mxu0 0.0
    %825 = vmatpush1.msra.mxu0 0.0
    %826 = vmatprep.subr.mxu0 0.0
    %827 = vmatpush1.msra.mxu0 0.0
    %828 = vmatprep.subr.mxu0 0.0
    %829 = vmatpush1.msra.mxu0 0.0
    %830 = vmatprep.subr.mxu0 0.0
    %831 = vmatpush1.msra.mxu0 0.0
    %832 = vmatprep.subr.mxu0 0.0
    %833 = vmatpush1.msra.mxu0 0.0
    %834 = vmatprep.subr.mxu0 0.0
    %835 = vmatpush1.msra.mxu0 0.0
    %836 = vmatprep.subr.mxu0 0.0
    %837 = vmatpush1.msra.mxu0 0.0
    %838 = vmatprep.subr.mxu0 0.0
    %839 = vmatpush1.msra.mxu0 0.0
    %840 = vmatprep.subr.mxu0 0.0
    %841 = vmatpush1.msra.mxu0 0.0
    %842 = vmatprep.mubr.f32.mxu0 0.0
    %843 = vmatmul.mubr.f32.gmra.mrb[0].mxu0 %v647
    %v844 = vpop.f32.mrb[0].mxu0
    %v845 = vadd.f32 %v770, %v844
    %v846 = vpop.f32.mrb[0].mxu0
    %847 = vmatprep.mubr.f32.mxu0 0.0
    %848 = vmatmul.mubr.f32.gmra.mrb[0].mxu0 %v652
    %v849 = vpop.f32.mrb[0].mxu0
    %v850 = vadd.f32 %v775, %v849
    %v851 = vpop.f32.mrb[0].mxu0
    %852 = vdwg.mxu0
    %v853 = vadd.f32 %v845, %v850
    %v854 = vrot.slane %v853, 4
    %v855 = vadd.f32 %v853, %v854
    %v856 = vrot.slane %v855, 2
    %v857 = vadd.f32 %v855, %v856
    %v858 = vrot.slane %v857, 1
    %v859 = vadd.f32 %v857, %v858
    %860 = vmatprep.subr.mxu0 0.0
    %861 = vmatpush1.msra.mxu0 %v290
    %862 = vmatprep.subr.mxu0 0.0
    %863 = vmatpush1.msra.mxu0 %v291
    %864 = vmatprep.subr.mxu0 0.0
    %865 = vmatpush1.msra.mxu0 %v292
    %866 = vmatprep.subr.mxu0 0.0
    %867 = vmatpush1.msra.mxu0 %v293
    %868 = vmatprep.subr.mxu0 0.0
    %869 = vmatpush1.msra.mxu0 %v294
    %870 = vmatprep.subr.mxu0 0.0
    %871 = vmatpush1.msra.mxu0 %v295
    %872 = vmatprep.subr.mxu0 0.0
    %873 = vmatpush1.msra.mxu0 %v296
    %874 = vmatprep.subr.mxu0 0.0
    %875 = vmatpush1.msra.mxu0 %v297
    %876 = vmatprep.subr.mxu0 0.0
    %877 = vmatpush1.msra.mxu0 %v298
    %878 = vmatprep.subr.mxu0 0.0
    %879 = vmatpush1.msra.mxu0 %v299
    %880 = vmatprep.subr.mxu0 0.0
    %881 = vmatpush1.msra.mxu0 %v300
    %882 = vmatprep.subr.mxu0 0.0
    %883 = vmatpush1.msra.mxu0 %v301
    %884 = vmatprep.subr.mxu0 0.0
    %885 = vmatpush1.msra.mxu0 %v302
    %886 = vmatprep.subr.mxu0 0.0
    %887 = vmatpush1.msra.mxu0 %v303
    %888 = vmatprep.subr.mxu0 0.0
    %889 = vmatpush1.msra.mxu0 %v304
    %890 = vmatprep.subr.mxu0 0.0
    %891 = vmatpush1.msra.mxu0 %v305
    %892 = vmatprep.subr.mxu0 0.0
    %893 = vmatpush1.msra.mxu0 0.0
    %894 = vmatprep.subr.mxu0 0.0
    %895 = vmatpush1.msra.mxu0 0.0
    %896 = vmatprep.subr.mxu0 0.0
    %897 = vmatpush1.msra.mxu0 0.0
    %898 = vmatprep.subr.mxu0 0.0
    %899 = vmatpush1.msra.mxu0 0.0
    %900 = vmatprep.subr.mxu0 0.0
    %901 = vmatpush1.msra.mxu0 0.0
    %902 = vmatprep.subr.mxu0 0.0
    %903 = vmatpush1.msra.mxu0 0.0
    %904 = vmatprep.subr.mxu0 0.0
    %905 = vmatpush1.msra.mxu0 0.0
    %906 = vmatprep.subr.mxu0 0.0
    %907 = vmatpush1.msra.mxu0 0.0
    %908 = vmatprep.subr.mxu0 0.0
    %909 = vmatpush1.msra.mxu0 0.0
    %910 = vmatprep.subr.mxu0 0.0
    %911 = vmatpush1.msra.mxu0 0.0
    %912 = vmatprep.subr.mxu0 0.0
    %913 = vmatpush1.msra.mxu0 0.0
    %914 = vmatprep.subr.mxu0 0.0
    %915 = vmatpush1.msra.mxu0 0.0
    %916 = vmatprep.subr.mxu0 0.0
    %917 = vmatpush1.msra.mxu0 0.0
    %918 = vmatprep.subr.mxu0 0.0
    %919 = vmatpush1.msra.mxu0 0.0
    %920 = vmatprep.subr.mxu0 0.0
    %921 = vmatpush1.msra.mxu0 0.0
    %922 = vmatprep.subr.mxu0 0.0
    %923 = vmatpush1.msra.mxu0 0.0
    %924 = vmatprep.mubr.f32.mxu0 0.0
    %925 = vmatmul.mubr.f32.gmra.mrb[0].mxu0 %v859
    %v926 = vpop.f32.mrb[0].mxu0
    %v927 = vadd.f32 0.0, %v926
    %v928 = vpop.f32.mrb[0].mxu0
    %929 = vdwg.mxu0
    %v930 = vlaneseq
    %v931 = vshrl.u32 %v930, 7
    %v932 = vsub.s32 0, %v931
    %v933 = vrot.slane %v927, %v932
    %v934 = vsub.f32 %v845, %v933
    %v935 = vsub.f32 %v850, %v933
    %v936 = vmul.f32 %v934, %v934
    %v937 = vmul.f32 %v935, %v935
    %v938 = vadd.f32 %v936, %v937
    %v939 = vrot.slane %v938, 4
    %v940 = vadd.f32 %v938, %v939
    %v941 = vrot.slane %v940, 2
    %v942 = vadd.f32 %v940, %v941
    %v943 = vrot.slane %v942, 1
    %v944 = vadd.f32 %v942, %v943
    %945 = vmatprep.subr.mxu0 0.0
    %946 = vmatpush1.msra.mxu0 %v290
    %947 = vmatprep.subr.mxu0 0.0
    %948 = vmatpush1.msra.mxu0 %v291
    %949 = vmatprep.subr.mxu0 0.0
    %950 = vmatpush1.msra.mxu0 %v292
    %951 = vmatprep.subr.mxu0 0.0
    %952 = vmatpush1.msra.mxu0 %v293
    %953 = vmatprep.subr.mxu0 0.0
    %954 = vmatpush1.msra.mxu0 %v294
    %955 = vmatprep.subr.mxu0 0.0
    %956 = vmatpush1.msra.mxu0 %v295
    %957 = vmatprep.subr.mxu0 0.0
    %958 = vmatpush1.msra.mxu0 %v296
    %959 = vmatprep.subr.mxu0 0.0
    %960 = vmatpush1.msra.mxu0 %v297
    %961 = vmatprep.subr.mxu0 0.0
    %962 = vmatpush1.msra.mxu0 %v298
    %963 = vmatprep.subr.mxu0 0.0
    %964 = vmatpush1.msra.mxu0 %v299
    %965 = vmatprep.subr.mxu0 0.0
    %966 = vmatpush1.msra.mxu0 %v300
    %967 = vmatprep.subr.mxu0 0.0
    %968 = vmatpush1.msra.mxu0 %v301
    %969 = vmatprep.subr.mxu0 0.0
    %970 = vmatpush1.msra.mxu0 %v302
    %971 = vmatprep.subr.mxu0 0.0
    %972 = vmatpush1.msra.mxu0 %v303
    %973 = vmatprep.subr.mxu0 0.0
    %974 = vmatpush1.msra.mxu0 %v304
    %975 = vmatprep.subr.mxu0 0.0
    %976 = vmatpush1.msra.mxu0 %v305
    %977 = vmatprep.subr.mxu0 0.0
    %978 = vmatpush1.msra.mxu0 0.0
    %979 = vmatprep.subr.mxu0 0.0
    %980 = vmatpush1.msra.mxu0 0.0
    %981 = vmatprep.subr.mxu0 0.0
    %982 = vmatpush1.msra.mxu0 0.0
    %983 = vmatprep.subr.mxu0 0.0
    %984 = vmatpush1.msra.mxu0 0.0
    %985 = vmatprep.subr.mxu0 0.0
    %986 = vmatpush1.msra.mxu0 0.0
    %987 = vmatprep.subr.mxu0 0.0
    %988 = vmatpush1.msra.mxu0 0.0
    %989 = vmatprep.subr.mxu0 0.0
    %990 = vmatpush1.msra.mxu0 0.0
    %991 = vmatprep.subr.mxu0 0.0
    %992 = vmatpush1.msra.mxu0 0.0
    %993 = vmatprep.subr.mxu0 0.0
    %994 = vmatpush1.msra.mxu0 0.0
    %995 = vmatprep.subr.mxu0 0.0
    %996 = vmatpush1.msra.mxu0 0.0
    %997 = vmatprep.subr.mxu0 0.0
    %998 = vmatpush1.msra.mxu0 0.0
    %999 = vmatprep.subr.mxu0 0.0
    %1000 = vmatpush1.msra.mxu0 0.0
    %1001 = vmatprep.subr.mxu0 0.0
    %1002 = vmatpush1.msra.mxu0 0.0
    %1003 = vmatprep.subr.mxu0 0.0
    %1004 = vmatpush1.msra.mxu0 0.0
    %1005 = vmatprep.subr.mxu0 0.0
    %1006 = vmatpush1.msra.mxu0 0.0
    %1007 = vmatprep.subr.mxu0 0.0
    %1008 = vmatpush1.msra.mxu0 0.0
    %1009 = vmatprep.mubr.f32.mxu0 0.0
    %1010 = vmatmul.mubr.f32.gmra.mrb[0].mxu0 %v944
    %v1011 = vpop.f32.mrb[0].mxu0
    %v1012 = vadd.f32 1e-05, %v1011
    %v1013 = vpop.f32.mrb[0].mxu0
    %1014 = vdwg.mxu0
    %v1015 = vrsqrt.pop %v1012
    %v1016 = vlaneseq
    %v1017 = vshrl.u32 %v1016, 7
    %v1018 = vsub.s32 0, %v1017
    %v1019 = vrot.slane %v1015, %v1018
    %v1020 = vmul.f32 %v934, %v1019
    %v1021 = vmul.f32 %v935, %v1019
    %v1022 = vld [vmem:[%s10] sm:$0x1]
    %v1024 = vlaneseq
    %v1025 = vshrl.u32 %v1024, 7
    %v1026 = vsub.s32 0, %v1025
    %v1027 = vrot.slane %v1022, %v1026
    %v1029 = vmul.f32 %v1020, %v1027
    %v1030 = vmul.f32 %v1021, %v1027
    %v1031 = vld [vmem:[%s11] sm:$0x1]
    %v1033 = vlaneseq
    %v1034 = vshrl.u32 %v1033, 7
    %v1035 = vsub.s32 0, %v1034
    %v1036 = vrot.slane %v1031, %v1035
    %v1038 = vadd.f32 %v1029, %v1036
    %v1039 = vadd.f32 %v1030, %v1036
    %v1040 = vmax.f32 %v1038, 0.0
    %v1041 = vmax.f32 %v1039, 0.0
    %v1042 = vld [vmem:[%s3] sm:$0xff]
    %v1043 = vld [vmem:[%s3 + $0x8] sm:$0xff]
    %v1044 = vld [vmem:[%s3 + $0x10] sm:$0xff]
    %v1045 = vld [vmem:[%s3 + $0x18] sm:$0xff]
    %v1046 = vld [vmem:[%s3 + $0x20] sm:$0xff]
    %v1047 = vld [vmem:[%s3 + $0x28] sm:$0xff]
    %v1048 = vld [vmem:[%s3 + $0x30] sm:$0xff]
    %v1049 = vld [vmem:[%s3 + $0x38] sm:$0xff]
    %v1050 = vld [vmem:[%s3 + $0x40] sm:$0xff]
    %v1051 = vld [vmem:[%s3 + $0x48] sm:$0xff]
    %v1052 = vld [vmem:[%s3 + $0x50] sm:$0xff]
    %v1053 = vld [vmem:[%s3 + $0x58] sm:$0xff]
    %v1054 = vld [vmem:[%s3 + $0x60] sm:$0xff]
    %v1055 = vld [vmem:[%s3 + $0x68] sm:$0xff]
    %v1056 = vld [vmem:[%s3 + $0x70] sm:$0xff]
    %v1057 = vld [vmem:[%s3 + $0x78] sm:$0xff]
    %v1058 = vld [vmem:[%s3 + $0x80] sm:$0xff]
    %v1059 = vld [vmem:[%s3 + $0x88] sm:$0xff]
    %v1060 = vld [vmem:[%s3 + $0x90] sm:$0xff]
    %v1061 = vld [vmem:[%s3 + $0x98] sm:$0xff]
    %v1062 = vld [vmem:[%s3 + $0xa0] sm:$0xff]
    %v1063 = vld [vmem:[%s3 + $0xa8] sm:$0xff]
    %v1064 = vld [vmem:[%s3 + $0xb0] sm:$0xff]
    %v1065 = vld [vmem:[%s3 + $0xb8] sm:$0xff]
    %v1066 = vld [vmem:[%s3 + $0xc0] sm:$0xff]
    %v1067 = vld [vmem:[%s3 + $0xc8] sm:$0xff]
    %v1068 = vld [vmem:[%s3 + $0xd0] sm:$0xff]
    %v1069 = vld [vmem:[%s3 + $0xd8] sm:$0xff]
    %v1070 = vld [vmem:[%s3 + $0xe0] sm:$0xff]
    %v1071 = vld [vmem:[%s3 + $0xe8] sm:$0xff]
    %v1072 = vld [vmem:[%s3 + $0xf0] sm:$0xff]
    %v1073 = vld [vmem:[%s3 + $0xf8] sm:$0xff]
    %v1074 = vld [vmem:[%s3 + $0x100] sm:$0xff]
    %v1075 = vld [vmem:[%s3 + $0x108] sm:$0xff]
    %v1076 = vld [vmem:[%s3 + $0x110] sm:$0xff]
    %v1077 = vld [vmem:[%s3 + $0x118] sm:$0xff]
    %v1078 = vld [vmem:[%s3 + $0x120] sm:$0xff]
    %v1079 = vld [vmem:[%s3 + $0x128] sm:$0xff]
    %v1080 = vld [vmem:[%s3 + $0x130] sm:$0xff]
    %v1081 = vld [vmem:[%s3 + $0x138] sm:$0xff]
    %v1082 = vld [vmem:[%s3 + $0x140] sm:$0xff]
    %v1083 = vld [vmem:[%s3 + $0x148] sm:$0xff]
    %v1084 = vld [vmem:[%s3 + $0x150] sm:$0xff]
    %v1085 = vld [vmem:[%s3 + $0x158] sm:$0xff]
    %v1086 = vld [vmem:[%s3 + $0x160] sm:$0xff]
    %v1087 = vld [vmem:[%s3 + $0x168] sm:$0xff]
    %v1088 = vld [vmem:[%s3 + $0x170] sm:$0xff]
    %v1089 = vld [vmem:[%s3 + $0x178] sm:$0xff]
    %v1090 = vld [vmem:[%s3 + $0x180] sm:$0xff]
    %v1091 = vld [vmem:[%s3 + $0x188] sm:$0xff]
    %v1092 = vld [vmem:[%s3 + $0x190] sm:$0xff]
    %v1093 = vld [vmem:[%s3 + $0x198] sm:$0xff]
    %v1094 = vld [vmem:[%s3 + $0x1a0] sm:$0xff]
    %v1095 = vld [vmem:[%s3 + $0x1a8] sm:$0xff]
    %v1096 = vld [vmem:[%s3 + $0x1b0] sm:$0xff]
    %v1097 = vld [vmem:[%s3 + $0x1b8] sm:$0xff]
    %v1098 = vld [vmem:[%s3 + $0x1c0] sm:$0xff]
    %v1099 = vld [vmem:[%s3 + $0x1c8] sm:$0xff]
    %v1100 = vld [vmem:[%s3 + $0x1d0] sm:$0xff]
    %v1101 = vld [vmem:[%s3 + $0x1d8] sm:$0xff]
    %v1102 = vld [vmem:[%s3 + $0x1e0] sm:$0xff]
    %v1103 = vld [vmem:[%s3 + $0x1e8] sm:$0xff]
    %v1104 = vld [vmem:[%s3 + $0x1f0] sm:$0xff]
    %v1105 = vld [vmem:[%s3 + $0x1f8] sm:$0xff]
    %1106 = vmatprep.subr.mxu0 %v1043
    %1107 = vmatpush1.msra.mxu0 %v1042
    %1108 = vmatprep.subr.mxu0 %v1047
    %1109 = vmatpush1.msra.mxu0 %v1046
    %1110 = vmatprep.subr.mxu0 %v1051
    %1111 = vmatpush1.msra.mxu0 %v1050
    %1112 = vmatprep.subr.mxu0 %v1055
    %1113 = vmatpush1.msra.mxu0 %v1054
    %1114 = vmatprep.subr.mxu0 %v1059
    %1115 = vmatpush1.msra.mxu0 %v1058
    %1116 = vmatprep.subr.mxu0 %v1063
    %1117 = vmatpush1.msra.mxu0 %v1062
    %1118 = vmatprep.subr.mxu0 %v1067
    %1119 = vmatpush1.msra.mxu0 %v1066
    %1120 = vmatprep.subr.mxu0 %v1071
    %1121 = vmatpush1.msra.mxu0 %v1070
    %1122 = vmatprep.subr.mxu0 %v1075
    %1123 = vmatpush1.msra.mxu0 %v1074
    %1124 = vmatprep.subr.mxu0 %v1079
    %1125 = vmatpush1.msra.mxu0 %v1078
    %1126 = vmatprep.subr.mxu0 %v1083
    %1127 = vmatpush1.msra.mxu0 %v1082
    %1128 = vmatprep.subr.mxu0 %v1087
    %1129 = vmatpush1.msra.mxu0 %v1086
    %1130 = vmatprep.subr.mxu0 %v1091
    %1131 = vmatpush1.msra.mxu0 %v1090
    %1132 = vmatprep.subr.mxu0 %v1095
    %1133 = vmatpush1.msra.mxu0 %v1094
    %1134 = vmatprep.subr.mxu0 %v1099
    %1135 = vmatpush1.msra.mxu0 %v1098
    %1136 = vmatprep.subr.mxu0 %v1103
    %1137 = vmatpush1.msra.mxu0 %v1102
    %1138 = vmatprep.subr.mxu0 0.0
    %1139 = vmatpush1.msra.mxu0 0.0
    %1140 = vmatprep.subr.mxu0 0.0
    %1141 = vmatpush1.msra.mxu0 0.0
    %1142 = vmatprep.subr.mxu0 0.0
    %1143 = vmatpush1.msra.mxu0 0.0
    %1144 = vmatprep.subr.mxu0 0.0
    %1145 = vmatpush1.msra.mxu0 0.0
    %1146 = vmatprep.subr.mxu0 0.0
    %1147 = vmatpush1.msra.mxu0 0.0
    %1148 = vmatprep.subr.mxu0 0.0
    %1149 = vmatpush1.msra.mxu0 0.0
    %1150 = vmatprep.subr.mxu0 0.0
    %1151 = vmatpush1.msra.mxu0 0.0
    %1152 = vmatprep.subr.mxu0 0.0
    %1153 = vmatpush1.msra.mxu0 0.0
    %1154 = vmatprep.subr.mxu0 0.0
    %1155 = vmatpush1.msra.mxu0 0.0
    %1156 = vmatprep.subr.mxu0 0.0
    %1157 = vmatpush1.msra.mxu0 0.0
    %1158 = vmatprep.subr.mxu0 0.0
    %1159 = vmatpush1.msra.mxu0 0.0
    %1160 = vmatprep.subr.mxu0 0.0
    %1161 = vmatpush1.msra.mxu0 0.0
    %1162 = vmatprep.subr.mxu0 0.0
    %1163 = vmatpush1.msra.mxu0 0.0
    %1164 = vmatprep.subr.mxu0 0.0
    %1165 = vmatpush1.msra.mxu0 0.0
    %1166 = vmatprep.subr.mxu0 0.0
    %1167 = vmatpush1.msra.mxu0 0.0
    %1168 = vmatprep.subr.mxu0 0.0
    %1169 = vmatpush1.msra.mxu0 0.0
    %1170 = vmatprep.mubr.f32.mxu0 0.0
    %1171 = vmatmul.mubr.f32.gmra.mrb[0].mxu0 %v1040
    %v1172 = vpop.f32.mrb[0].mxu0
    %v1173 = vadd.f32 0.0, %v1172
    %v1174 = vpop.f32.mrb[0].mxu0
    %v1175 = vadd.f32 0.0, %v1174
    %1176 = vmatprep.mubr.f32.mxu0 0.0
    %1177 = vmatmul.mubr.f32.gmra.mrb[0].mxu0 %v1041
    %v1178 = vpop.f32.mrb[0].mxu0
    %v1179 = vadd.f32 0.0, %v1178
    %v1180 = vpop.f32.mrb[0].mxu0
    %v1181 = vadd.f32 0.0, %v1180
    %1182 = vdwg.mxu0
    %1183 = vmatprep.subr.mxu0 %v1045
    %1184 = vmatpush1.msra.mxu0 %v1044
    %1185 = vmatprep.subr.mxu0 %v1049
    %1186 = vmatpush1.msra.mxu0 %v1048
    %1187 = vmatprep.subr.mxu0 %v1053
    %1188 = vmatpush1.msra.mxu0 %v1052
    %1189 = vmatprep.subr.mxu0 %v1057
    %1190 = vmatpush1.msra.mxu0 %v1056
    %1191 = vmatprep.subr.mxu0 %v1061
    %1192 = vmatpush1.msra.mxu0 %v1060
    %1193 = vmatprep.subr.mxu0 %v1065
    %1194 = vmatpush1.msra.mxu0 %v1064
    %1195 = vmatprep.subr.mxu0 %v1069
    %1196 = vmatpush1.msra.mxu0 %v1068
    %1197 = vmatprep.subr.mxu0 %v1073
    %1198 = vmatpush1.msra.mxu0 %v1072
    %1199 = vmatprep.subr.mxu0 %v1077
    %1200 = vmatpush1.msra.mxu0 %v1076
    %1201 = vmatprep.subr.mxu0 %v1081
    %1202 = vmatpush1.msra.mxu0 %v1080
    %1203 = vmatprep.subr.mxu0 %v1085
    %1204 = vmatpush1.msra.mxu0 %v1084
    %1205 = vmatprep.subr.mxu0 %v1089
    %1206 = vmatpush1.msra.mxu0 %v1088
    %1207 = vmatprep.subr.mxu0 %v1093
    %1208 = vmatpush1.msra.mxu0 %v1092
    %1209 = vmatprep.subr.mxu0 %v1097
    %1210 = vmatpush1.msra.mxu0 %v1096
    %1211 = vmatprep.subr.mxu0 %v1101
    %1212 = vmatpush1.msra.mxu0 %v1100
    %1213 = vmatprep.subr.mxu0 %v1105
    %1214 = vmatpush1.msra.mxu0 %v1104
    %1215 = vmatprep.subr.mxu0 0.0
    %1216 = vmatpush1.msra.mxu0 0.0
    %1217 = vmatprep.subr.mxu0 0.0
    %1218 = vmatpush1.msra.mxu0 0.0
    %1219 = vmatprep.subr.mxu0 0.0
    %1220 = vmatpush1.msra.mxu0 0.0
    %1221 = vmatprep.subr.mxu0 0.0
    %1222 = vmatpush1.msra.mxu0 0.0
    %1223 = vmatprep.subr.mxu0 0.0
    %1224 = vmatpush1.msra.mxu0 0.0
    %1225 = vmatprep.subr.mxu0 0.0
    %1226 = vmatpush1.msra.mxu0 0.0
    %1227 = vmatprep.subr.mxu0 0.0
    %1228 = vmatpush1.msra.mxu0 0.0
    %1229 = vmatprep.subr.mxu0 0.0
    %1230 = vmatpush1.msra.mxu0 0.0
    %1231 = vmatprep.subr.mxu0 0.0
    %1232 = vmatpush1.msra.mxu0 0.0
    %1233 = vmatprep.subr.mxu0 0.0
    %1234 = vmatpush1.msra.mxu0 0.0
    %1235 = vmatprep.subr.mxu0 0.0
    %1236 = vmatpush1.msra.mxu0 0.0
    %1237 = vmatprep.subr.mxu0 0.0
    %1238 = vmatpush1.msra.mxu0 0.0
    %1239 = vmatprep.subr.mxu0 0.0
    %1240 = vmatpush1.msra.mxu0 0.0
    %1241 = vmatprep.subr.mxu0 0.0
    %1242 = vmatpush1.msra.mxu0 0.0
    %1243 = vmatprep.subr.mxu0 0.0
    %1244 = vmatpush1.msra.mxu0 0.0
    %1245 = vmatprep.subr.mxu0 0.0
    %1246 = vmatpush1.msra.mxu0 0.0
    %1247 = vmatprep.mubr.f32.mxu0 0.0
    %1248 = vmatmul.mubr.f32.gmra.mrb[0].mxu0 %v1040
    %v1249 = vpop.f32.mrb[0].mxu0
    %v1250 = vadd.f32 0.0, %v1249
    %v1251 = vpop.f32.mrb[0].mxu0
    %v1252 = vadd.f32 0.0, %v1251
    %1253 = vmatprep.mubr.f32.mxu0 0.0
    %1254 = vmatmul.mubr.f32.gmra.mrb[0].mxu0 %v1041
    %v1255 = vpop.f32.mrb[0].mxu0
    %v1256 = vadd.f32 0.0, %v1255
    %v1257 = vpop.f32.mrb[0].mxu0
    %v1258 = vadd.f32 0.0, %v1257
    %1259 = vdwg.mxu0
    %v1260 = vadd.f32 %v1173, %v1179
    %v1261 = vrot.slane %v1260, 4
    %v1262 = vadd.f32 %v1260, %v1261
    %v1263 = vrot.slane %v1262, 2
    %v1264 = vadd.f32 %v1262, %v1263
    %v1265 = vrot.slane %v1264, 1
    %v1266 = vadd.f32 %v1264, %v1265
    %v1267 = vadd.f32 %v1175, %v1181
    %v1268 = vrot.slane %v1267, 4
    %v1269 = vadd.f32 %v1267, %v1268
    %v1270 = vrot.slane %v1269, 2
    %v1271 = vadd.f32 %v1269, %v1270
    %v1272 = vrot.slane %v1271, 1
    %v1273 = vadd.f32 %v1271, %v1272
    %v1274 = vadd.f32 %v1250, %v1256
    %v1275 = vrot.slane %v1274, 4
    %v1276 = vadd.f32 %v1274, %v1275
    %v1277 = vrot.slane %v1276, 2
    %v1278 = vadd.f32 %v1276, %v1277
    %v1279 = vrot.slane %v1278, 1
    %v1280 = vadd.f32 %v1278, %v1279
    %v1281 = vadd.f32 %v1252, %v1258
    %v1282 = vrot.slane %v1281, 4
    %v1283 = vadd.f32 %v1281, %v1282
    %v1284 = vrot.slane %v1283, 2
    %v1285 = vadd.f32 %v1283, %v1284
    %v1286 = vrot.slane %v1285, 1
    %v1287 = vadd.f32 %v1285, %v1286
    %v1288 = vld [vmem:[#allocation2] sm:$0xff]
    %v1289 = vld [vmem:[#allocation2 + $0x8] sm:$0xff]
    %v1290 = vld [vmem:[#allocation2 + $0x10] sm:$0xff]
    %v1291 = vld [vmem:[#allocation2 + $0x18] sm:$0xff]
    %v1292 = vld [vmem:[#allocation2 + $0x20] sm:$0xff]
    %v1293 = vld [vmem:[#allocation2 + $0x28] sm:$0xff]
    %v1294 = vld [vmem:[#allocation2 + $0x30] sm:$0xff]
    %v1295 = vld [vmem:[#allocation2 + $0x38] sm:$0xff]
    %v1296 = vld [vmem:[#allocation2 + $0x40] sm:$0xff]
    %v1297 = vld [vmem:[#allocation2 + $0x48] sm:$0xff]
    %v1298 = vld [vmem:[#allocation2 + $0x50] sm:$0xff]
    %v1299 = vld [vmem:[#allocation2 + $0x58] sm:$0xff]
    %v1300 = vld [vmem:[#allocation2 + $0x60] sm:$0xff]
    %v1301 = vld [vmem:[#allocation2 + $0x68] sm:$0xff]
    %v1302 = vld [vmem:[#allocation2 + $0x70] sm:$0xff]
    %v1303 = vld [vmem:[#allocation2 + $0x78] sm:$0xff]
    %v1304 = vld [vmem:[#allocation2 + $0x80] sm:$0xff]
    %v1305 = vld [vmem:[#allocation2 + $0x88] sm:$0xff]
    %v1306 = vld [vmem:[#allocation2 + $0x90] sm:$0xff]
    %v1307 = vld [vmem:[#allocation2 + $0x98] sm:$0xff]
    %v1308 = vld [vmem:[#allocation2 + $0xa0] sm:$0xff]
    %v1309 = vld [vmem:[#allocation2 + $0xa8] sm:$0xff]
    %v1310 = vld [vmem:[#allocation2 + $0xb0] sm:$0xff]
    %v1311 = vld [vmem:[#allocation2 + $0xb8] sm:$0xff]
    %v1312 = vld [vmem:[#allocation2 + $0xc0] sm:$0xff]
    %v1313 = vld [vmem:[#allocation2 + $0xc8] sm:$0xff]
    %v1314 = vld [vmem:[#allocation2 + $0xd0] sm:$0xff]
    %v1315 = vld [vmem:[#allocation2 + $0xd8] sm:$0xff]
    %v1316 = vld [vmem:[#allocation2 + $0xe0] sm:$0xff]
    %v1317 = vld [vmem:[#allocation2 + $0xe8] sm:$0xff]
    %v1318 = vld [vmem:[#allocation2 + $0xf0] sm:$0xff]
    %v1319 = vld [vmem:[#allocation2 + $0xf8] sm:$0xff]
    %v1320 = vld [vmem:[#allocation2 + $0x100] sm:$0xff]
    %v1321 = vld [vmem:[#allocation2 + $0x108] sm:$0xff]
    %v1322 = vld [vmem:[#allocation2 + $0x110] sm:$0xff]
    %v1323 = vld [vmem:[#allocation2 + $0x118] sm:$0xff]
    %v1324 = vld [vmem:[#allocation2 + $0x120] sm:$0xff]
    %v1325 = vld [vmem:[#allocation2 + $0x128] sm:$0xff]
    %v1326 = vld [vmem:[#allocation2 + $0x130] sm:$0xff]
    %v1327 = vld [vmem:[#allocation2 + $0x138] sm:$0xff]
    %v1328 = vld [vmem:[#allocation2 + $0x140] sm:$0xff]
    %v1329 = vld [vmem:[#allocation2 + $0x148] sm:$0xff]
    %v1330 = vld [vmem:[#allocation2 + $0x150] sm:$0xff]
    %v1331 = vld [vmem:[#allocation2 + $0x158] sm:$0xff]
    %v1332 = vld [vmem:[#allocation2 + $0x160] sm:$0xff]
    %v1333 = vld [vmem:[#allocation2 + $0x168] sm:$0xff]
    %v1334 = vld [vmem:[#allocation2 + $0x170] sm:$0xff]
    %v1335 = vld [vmem:[#allocation2 + $0x178] sm:$0xff]
    %v1336 = vld [vmem:[#allocation2 + $0x180] sm:$0xff]
    %v1337 = vld [vmem:[#allocation2 + $0x188] sm:$0xff]
    %v1338 = vld [vmem:[#allocation2 + $0x190] sm:$0xff]
    %v1339 = vld [vmem:[#allocation2 + $0x198] sm:$0xff]
    %v1340 = vld [vmem:[#allocation2 + $0x1a0] sm:$0xff]
    %v1341 = vld [vmem:[#allocation2 + $0x1a8] sm:$0xff]
    %v1342 = vld [vmem:[#allocation2 + $0x1b0] sm:$0xff]
    %v1343 = vld [vmem:[#allocation2 + $0x1b8] sm:$0xff]
    %v1344 = vld [vmem:[#allocation2 + $0x1c0] sm:$0xff]
    %v1345 = vld [vmem:[#allocation2 + $0x1c8] sm:$0xff]
    %v1346 = vld [vmem:[#allocation2 + $0x1d0] sm:$0xff]
    %v1347 = vld [vmem:[#allocation2 + $0x1d8] sm:$0xff]
    %v1348 = vld [vmem:[#allocation2 + $0x1e0] sm:$0xff]
    %v1349 = vld [vmem:[#allocation2 + $0x1e8] sm:$0xff]
    %v1350 = vld [vmem:[#allocation2 + $0x1f0] sm:$0xff]
    %v1351 = vld [vmem:[#allocation2 + $0x1f8] sm:$0xff]
    %v1352 = vld [vmem:[#allocation2 + $0x200] sm:$0xff]
    %v1353 = vld [vmem:[#allocation2 + $0x208] sm:$0xff]
    %v1354 = vld [vmem:[#allocation2 + $0x210] sm:$0xff]
    %v1355 = vld [vmem:[#allocation2 + $0x218] sm:$0xff]
    %v1356 = vld [vmem:[#allocation2 + $0x220] sm:$0xff]
    %v1357 = vld [vmem:[#allocation2 + $0x228] sm:$0xff]
    %v1358 = vld [vmem:[#allocation2 + $0x230] sm:$0xff]
    %v1359 = vld [vmem:[#allocation2 + $0x238] sm:$0xff]
    %v1360 = vld [vmem:[#allocation2 + $0x240] sm:$0xff]
    %v1361 = vld [vmem:[#allocation2 + $0x248] sm:$0xff]
    %v1362 = vld [vmem:[#allocation2 + $0x250] sm:$0xff]
    %v1363 = vld [vmem:[#allocation2 + $0x258] sm:$0xff]
    %v1364 = vld [vmem:[#allocation2 + $0x260] sm:$0xff]
    %v1365 = vld [vmem:[#allocation2 + $0x268] sm:$0xff]
    %v1366 = vld [vmem:[#allocation2 + $0x270] sm:$0xff]
    %v1367 = vld [vmem:[#allocation2 + $0x278] sm:$0xff]
    %v1368 = vld [vmem:[#allocation2 + $0x280] sm:$0xff]
    %v1369 = vld [vmem:[#allocation2 + $0x288] sm:$0xff]
    %v1370 = vld [vmem:[#allocation2 + $0x290] sm:$0xff]
    %v1371 = vld [vmem:[#allocation2 + $0x298] sm:$0xff]
    %v1372 = vld [vmem:[#allocation2 + $0x2a0] sm:$0xff]
    %v1373 = vld [vmem:[#allocation2 + $0x2a8] sm:$0xff]
    %v1374 = vld [vmem:[#allocation2 + $0x2b0] sm:$0xff]
    %v1375 = vld [vmem:[#allocation2 + $0x2b8] sm:$0xff]
    %v1376 = vld [vmem:[#allocation2 + $0x2c0] sm:$0xff]
    %v1377 = vld [vmem:[#allocation2 + $0x2c8] sm:$0xff]
    %v1378 = vld [vmem:[#allocation2 + $0x2d0] sm:$0xff]
    %v1379 = vld [vmem:[#allocation2 + $0x2d8] sm:$0xff]
    %v1380 = vld [vmem:[#allocation2 + $0x2e0] sm:$0xff]
    %v1381 = vld [vmem:[#allocation2 + $0x2e8] sm:$0xff]
    %v1382 = vld [vmem:[#allocation2 + $0x2f0] sm:$0xff]
    %v1383 = vld [vmem:[#allocation2 + $0x2f8] sm:$0xff]
    %v1384 = vld [vmem:[#allocation2 + $0x300] sm:$0xff]
    %v1385 = vld [vmem:[#allocation2 + $0x308] sm:$0xff]
    %v1386 = vld [vmem:[#allocation2 + $0x310] sm:$0xff]
    %v1387 = vld [vmem:[#allocation2 + $0x318] sm:$0xff]
    %v1388 = vld [vmem:[#allocation2 + $0x320] sm:$0xff]
    %v1389 = vld [vmem:[#allocation2 + $0x328] sm:$0xff]
    %v1390 = vld [vmem:[#allocation2 + $0x330] sm:$0xff]
    %v1391 = vld [vmem:[#allocation2 + $0x338] sm:$0xff]
    %v1392 = vld [vmem:[#allocation2 + $0x340] sm:$0xff]
    %v1393 = vld [vmem:[#allocation2 + $0x348] sm:$0xff]
    %v1394 = vld [vmem:[#allocation2 + $0x350] sm:$0xff]
    %v1395 = vld [vmem:[#allocation2 + $0x358] sm:$0xff]
    %v1396 = vld [vmem:[#allocation2 + $0x360] sm:$0xff]
    %v1397 = vld [vmem:[#allocation2 + $0x368] sm:$0xff]
    %v1398 = vld [vmem:[#allocation2 + $0x370] sm:$0xff]
    %v1399 = vld [vmem:[#allocation2 + $0x378] sm:$0xff]
    %v1400 = vld [vmem:[#allocation2 + $0x380] sm:$0xff]
    %v1401 = vld [vmem:[#allocation2 + $0x388] sm:$0xff]
    %v1402 = vld [vmem:[#allocation2 + $0x390] sm:$0xff]
    %v1403 = vld [vmem:[#allocation2 + $0x398] sm:$0xff]
    %v1404 = vld [vmem:[#allocation2 + $0x3a0] sm:$0xff]
    %v1405 = vld [vmem:[#allocation2 + $0x3a8] sm:$0xff]
    %v1406 = vld [vmem:[#allocation2 + $0x3b0] sm:$0xff]
    %v1407 = vld [vmem:[#allocation2 + $0x3b8] sm:$0xff]
    %v1408 = vld [vmem:[#allocation2 + $0x3c0] sm:$0xff]
    %v1409 = vld [vmem:[#allocation2 + $0x3c8] sm:$0xff]
    %v1410 = vld [vmem:[#allocation2 + $0x3d0] sm:$0xff]
    %v1411 = vld [vmem:[#allocation2 + $0x3d8] sm:$0xff]
    %v1412 = vld [vmem:[#allocation2 + $0x3e0] sm:$0xff]
    %v1413 = vld [vmem:[#allocation2 + $0x3e8] sm:$0xff]
    %v1414 = vld [vmem:[#allocation2 + $0x3f0] sm:$0xff]
    %v1415 = vld [vmem:[#allocation2 + $0x3f8] sm:$0xff]
    %v1416 = vld [vmem:[#allocation2 + $0x400] sm:$0xff]
    %v1417 = vld [vmem:[#allocation2 + $0x408] sm:$0xff]
    %v1418 = vld [vmem:[#allocation2 + $0x410] sm:$0xff]
    %v1419 = vld [vmem:[#allocation2 + $0x418] sm:$0xff]
    %v1420 = vld [vmem:[#allocation2 + $0x420] sm:$0xff]
    %v1421 = vld [vmem:[#allocation2 + $0x428] sm:$0xff]
    %v1422 = vld [vmem:[#allocation2 + $0x430] sm:$0xff]
    %v1423 = vld [vmem:[#allocation2 + $0x438] sm:$0xff]
    %v1424 = vld [vmem:[#allocation2 + $0x440] sm:$0xff]
    %v1425 = vld [vmem:[#allocation2 + $0x448] sm:$0xff]
    %v1426 = vld [vmem:[#allocation2 + $0x450] sm:$0xff]
    %v1427 = vld [vmem:[#allocation2 + $0x458] sm:$0xff]
    %v1428 = vld [vmem:[#allocation2 + $0x460] sm:$0xff]
    %v1429 = vld [vmem:[#allocation2 + $0x468] sm:$0xff]
    %v1430 = vld [vmem:[#allocation2 + $0x470] sm:$0xff]
    %v1431 = vld [vmem:[#allocation2 + $0x478] sm:$0xff]
    %v1432 = vld [vmem:[#allocation2 + $0x480] sm:$0xff]
    %v1433 = vld [vmem:[#allocation2 + $0x488] sm:$0xff]
    %v1434 = vld [vmem:[#allocation2 + $0x490] sm:$0xff]
    %v1435 = vld [vmem:[#allocation2 + $0x498] sm:$0xff]
    %v1436 = vld [vmem:[#allocation2 + $0x4a0] sm:$0xff]
    %v1437 = vld [vmem:[#allocation2 + $0x4a8] sm:$0xff]
    %v1438 = vld [vmem:[#allocation2 + $0x4b0] sm:$0xff]
    %v1439 = vld [vmem:[#allocation2 + $0x4b8] sm:$0xff]
    %v1440 = vld [vmem:[#allocation2 + $0x4c0] sm:$0xff]
    %v1441 = vld [vmem:[#allocation2 + $0x4c8] sm:$0xff]
    %v1442 = vld [vmem:[#allocation2 + $0x4d0] sm:$0xff]
    %v1443 = vld [vmem:[#allocation2 + $0x4d8] sm:$0xff]
    %v1444 = vld [vmem:[#allocation2 + $0x4e0] sm:$0xff]
    %v1445 = vld [vmem:[#allocation2 + $0x4e8] sm:$0xff]
    %v1446 = vld [vmem:[#allocation2 + $0x4f0] sm:$0xff]
    %v1447 = vld [vmem:[#allocation2 + $0x4f8] sm:$0xff]
    %v1448 = vld [vmem:[#allocation2 + $0x500] sm:$0xff]
    %v1449 = vld [vmem:[#allocation2 + $0x508] sm:$0xff]
    %v1450 = vld [vmem:[#allocation2 + $0x510] sm:$0xff]
    %v1451 = vld [vmem:[#allocation2 + $0x518] sm:$0xff]
    %v1452 = vld [vmem:[#allocation2 + $0x520] sm:$0xff]
    %v1453 = vld [vmem:[#allocation2 + $0x528] sm:$0xff]
    %v1454 = vld [vmem:[#allocation2 + $0x530] sm:$0xff]
    %v1455 = vld [vmem:[#allocation2 + $0x538] sm:$0xff]
    %v1456 = vld [vmem:[#allocation2 + $0x540] sm:$0xff]
    %v1457 = vld [vmem:[#allocation2 + $0x548] sm:$0xff]
    %v1458 = vld [vmem:[#allocation2 + $0x550] sm:$0xff]
    %v1459 = vld [vmem:[#allocation2 + $0x558] sm:$0xff]
    %v1460 = vld [vmem:[#allocation2 + $0x560] sm:$0xff]
    %v1461 = vld [vmem:[#allocation2 + $0x568] sm:$0xff]
    %v1462 = vld [vmem:[#allocation2 + $0x570] sm:$0xff]
    %v1463 = vld [vmem:[#allocation2 + $0x578] sm:$0xff]
    %v1464 = vld [vmem:[#allocation2 + $0x580] sm:$0xff]
    %v1465 = vld [vmem:[#allocation2 + $0x588] sm:$0xff]
    %v1466 = vld [vmem:[#allocation2 + $0x590] sm:$0xff]
    %v1467 = vld [vmem:[#allocation2 + $0x598] sm:$0xff]
    %v1468 = vld [vmem:[#allocation2 + $0x5a0] sm:$0xff]
    %v1469 = vld [vmem:[#allocation2 + $0x5a8] sm:$0xff]
    %v1470 = vld [vmem:[#allocation2 + $0x5b0] sm:$0xff]
    %v1471 = vld [vmem:[#allocation2 + $0x5b8] sm:$0xff]
    %v1472 = vld [vmem:[#allocation2 + $0x5c0] sm:$0xff]
    %v1473 = vld [vmem:[#allocation2 + $0x5c8] sm:$0xff]
    %v1474 = vld [vmem:[#allocation2 + $0x5d0] sm:$0xff]
    %v1475 = vld [vmem:[#allocation2 + $0x5d8] sm:$0xff]
    %v1476 = vld [vmem:[#allocation2 + $0x5e0] sm:$0xff]
    %v1477 = vld [vmem:[#allocation2 + $0x5e8] sm:$0xff]
    %v1478 = vld [vmem:[#allocation2 + $0x5f0] sm:$0xff]
    %v1479 = vld [vmem:[#allocation2 + $0x5f8] sm:$0xff]
    %v1480 = vld [vmem:[#allocation2 + $0x600] sm:$0xff]
    %v1481 = vld [vmem:[#allocation2 + $0x608] sm:$0xff]
    %v1482 = vld [vmem:[#allocation2 + $0x610] sm:$0xff]
    %v1483 = vld [vmem:[#allocation2 + $0x618] sm:$0xff]
    %v1484 = vld [vmem:[#allocation2 + $0x620] sm:$0xff]
    %v1485 = vld [vmem:[#allocation2 + $0x628] sm:$0xff]
    %v1486 = vld [vmem:[#allocation2 + $0x630] sm:$0xff]
    %v1487 = vld [vmem:[#allocation2 + $0x638] sm:$0xff]
    %v1488 = vld [vmem:[#allocation2 + $0x640] sm:$0xff]
    %v1489 = vld [vmem:[#allocation2 + $0x648] sm:$0xff]
    %v1490 = vld [vmem:[#allocation2 + $0x650] sm:$0xff]
    %v1491 = vld [vmem:[#allocation2 + $0x658] sm:$0xff]
    %v1492 = vld [vmem:[#allocation2 + $0x660] sm:$0xff]
    %v1493 = vld [vmem:[#allocation2 + $0x668] sm:$0xff]
    %v1494 = vld [vmem:[#allocation2 + $0x670] sm:$0xff]
    %v1495 = vld [vmem:[#allocation2 + $0x678] sm:$0xff]
    %v1496 = vld [vmem:[#allocation2 + $0x680] sm:$0xff]
    %v1497 = vld [vmem:[#allocation2 + $0x688] sm:$0xff]
    %v1498 = vld [vmem:[#allocation2 + $0x690] sm:$0xff]
    %v1499 = vld [vmem:[#allocation2 + $0x698] sm:$0xff]
    %v1500 = vld [vmem:[#allocation2 + $0x6a0] sm:$0xff]
    %v1501 = vld [vmem:[#allocation2 + $0x6a8] sm:$0xff]
    %v1502 = vld [vmem:[#allocation2 + $0x6b0] sm:$0xff]
    %v1503 = vld [vmem:[#allocation2 + $0x6b8] sm:$0xff]
    %v1504 = vld [vmem:[#allocation2 + $0x6c0] sm:$0xff]
    %v1505 = vld [vmem:[#allocation2 + $0x6c8] sm:$0xff]
    %v1506 = vld [vmem:[#allocation2 + $0x6d0] sm:$0xff]
    %v1507 = vld [vmem:[#allocation2 + $0x6d8] sm:$0xff]
    %v1508 = vld [vmem:[#allocation2 + $0x6e0] sm:$0xff]
    %v1509 = vld [vmem:[#allocation2 + $0x6e8] sm:$0xff]
    %v1510 = vld [vmem:[#allocation2 + $0x6f0] sm:$0xff]
    %v1511 = vld [vmem:[#allocation2 + $0x6f8] sm:$0xff]
    %v1512 = vld [vmem:[#allocation2 + $0x700] sm:$0xff]
    %v1513 = vld [vmem:[#allocation2 + $0x708] sm:$0xff]
    %v1514 = vld [vmem:[#allocation2 + $0x710] sm:$0xff]
    %v1515 = vld [vmem:[#allocation2 + $0x718] sm:$0xff]
    %v1516 = vld [vmem:[#allocation2 + $0x720] sm:$0xff]
    %v1517 = vld [vmem:[#allocation2 + $0x728] sm:$0xff]
    %v1518 = vld [vmem:[#allocation2 + $0x730] sm:$0xff]
    %v1519 = vld [vmem:[#allocation2 + $0x738] sm:$0xff]
    %v1520 = vld [vmem:[#allocation2 + $0x740] sm:$0xff]
    %v1521 = vld [vmem:[#allocation2 + $0x748] sm:$0xff]
    %v1522 = vld [vmem:[#allocation2 + $0x750] sm:$0xff]
    %v1523 = vld [vmem:[#allocation2 + $0x758] sm:$0xff]
    %v1524 = vld [vmem:[#allocation2 + $0x760] sm:$0xff]
    %v1525 = vld [vmem:[#allocation2 + $0x768] sm:$0xff]
    %v1526 = vld [vmem:[#allocation2 + $0x770] sm:$0xff]
    %v1527 = vld [vmem:[#allocation2 + $0x778] sm:$0xff]
    %v1528 = vld [vmem:[#allocation2 + $0x780] sm:$0xff]
    %v1529 = vld [vmem:[#allocation2 + $0x788] sm:$0xff]
    %v1530 = vld [vmem:[#allocation2 + $0x790] sm:$0xff]
    %v1531 = vld [vmem:[#allocation2 + $0x798] sm:$0xff]
    %v1532 = vld [vmem:[#allocation2 + $0x7a0] sm:$0xff]
    %v1533 = vld [vmem:[#allocation2 + $0x7a8] sm:$0xff]
    %v1534 = vld [vmem:[#allocation2 + $0x7b0] sm:$0xff]
    %v1535 = vld [vmem:[#allocation2 + $0x7b8] sm:$0xff]
    %v1536 = vld [vmem:[#allocation2 + $0x7c0] sm:$0xff]
    %v1537 = vld [vmem:[#allocation2 + $0x7c8] sm:$0xff]
    %v1538 = vld [vmem:[#allocation2 + $0x7d0] sm:$0xff]
    %v1539 = vld [vmem:[#allocation2 + $0x7d8] sm:$0xff]
    %v1540 = vld [vmem:[#allocation2 + $0x7e0] sm:$0xff]
    %v1541 = vld [vmem:[#allocation2 + $0x7e8] sm:$0xff]
    %v1542 = vld [vmem:[#allocation2 + $0x7f0] sm:$0xff]
    %v1543 = vld [vmem:[#allocation2 + $0x7f8] sm:$0xff]
    %1544 = vmatprep.subr.mxu0 %v1289
    %1545 = vmatpush1.msra.mxu0 %v1288
    %1546 = vmatprep.subr.mxu0 %v1293
    %1547 = vmatpush1.msra.mxu0 %v1292
    %1548 = vmatprep.subr.mxu0 %v1297
    %1549 = vmatpush1.msra.mxu0 %v1296
    %1550 = vmatprep.subr.mxu0 %v1301
    %1551 = vmatpush1.msra.mxu0 %v1300
    %1552 = vmatprep.subr.mxu0 %v1305
    %1553 = vmatpush1.msra.mxu0 %v1304
    %1554 = vmatprep.subr.mxu0 %v1309
    %1555 = vmatpush1.msra.mxu0 %v1308
    %1556 = vmatprep.subr.mxu0 %v1313
    %1557 = vmatpush1.msra.mxu0 %v1312
    %1558 = vmatprep.subr.mxu0 %v1317
    %1559 = vmatpush1.msra.mxu0 %v1316
    %1560 = vmatprep.subr.mxu0 %v1321
    %1561 = vmatpush1.msra.mxu0 %v1320
    %1562 = vmatprep.subr.mxu0 %v1325
    %1563 = vmatpush1.msra.mxu0 %v1324
    %1564 = vmatprep.subr.mxu0 %v1329
    %1565 = vmatpush1.msra.mxu0 %v1328
    %1566 = vmatprep.subr.mxu0 %v1333
    %1567 = vmatpush1.msra.mxu0 %v1332
    %1568 = vmatprep.subr.mxu0 %v1337
    %1569 = vmatpush1.msra.mxu0 %v1336
    %1570 = vmatprep.subr.mxu0 %v1341
    %1571 = vmatpush1.msra.mxu0 %v1340
    %1572 = vmatprep.subr.mxu0 %v1345
    %1573 = vmatpush1.msra.mxu0 %v1344
    %1574 = vmatprep.subr.mxu0 %v1349
    %1575 = vmatpush1.msra.mxu0 %v1348
    %1576 = vmatprep.subr.mxu0 %v1353
    %1577 = vmatpush1.msra.mxu0 %v1352
    %1578 = vmatprep.subr.mxu0 %v1357
    %1579 = vmatpush1.msra.mxu0 %v1356
    %1580 = vmatprep.subr.mxu0 %v1361
    %1581 = vmatpush1.msra.mxu0 %v1360
    %1582 = vmatprep.subr.mxu0 %v1365
    %1583 = vmatpush1.msra.mxu0 %v1364
    %1584 = vmatprep.subr.mxu0 %v1369
    %1585 = vmatpush1.msra.mxu0 %v1368
    %1586 = vmatprep.subr.mxu0 %v1373
    %1587 = vmatpush1.msra.mxu0 %v1372
    %1588 = vmatprep.subr.mxu0 %v1377
    %1589 = vmatpush1.msra.mxu0 %v1376
    %1590 = vmatprep.subr.mxu0 %v1381
    %1591 = vmatpush1.msra.mxu0 %v1380
    %1592 = vmatprep.subr.mxu0 %v1385
    %1593 = vmatpush1.msra.mxu0 %v1384
    %1594 = vmatprep.subr.mxu0 %v1389
    %1595 = vmatpush1.msra.mxu0 %v1388
    %1596 = vmatprep.subr.mxu0 %v1393
    %1597 = vmatpush1.msra.mxu0 %v1392
    %1598 = vmatprep.subr.mxu0 %v1397
    %1599 = vmatpush1.msra.mxu0 %v1396
    %1600 = vmatprep.subr.mxu0 %v1401
    %1601 = vmatpush1.msra.mxu0 %v1400
    %1602 = vmatprep.subr.mxu0 %v1405
    %1603 = vmatpush1.msra.mxu0 %v1404
    %1604 = vmatprep.subr.mxu0 %v1409
    %1605 = vmatpush1.msra.mxu0 %v1408
    %1606 = vmatprep.subr.mxu0 %v1413
    %1607 = vmatpush1.msra.mxu0 %v1412
    %1608 = vmatprep.mubr.f32.mxu0 %v1273
    %1609 = vmatmul.mubr.f32.gmra.mrb[0].mxu0 %v1266
    %v1610 = vpop.f32.mrb[0].mxu0
    %v1611 = vadd.f32 0.0, %v1610
    %v1612 = vpop.f32.mrb[0].mxu0
    %v1613 = vadd.f32 0.0, %v1612
    %1614 = vdwg.mxu0
    %1615 = vmatprep.subr.mxu0 %v1417
    %1616 = vmatpush1.msra.mxu0 %v1416
    %1617 = vmatprep.subr.mxu0 %v1421
    %1618 = vmatpush1.msra.mxu0 %v1420
    %1619 = vmatprep.subr.mxu0 %v1425
    %1620 = vmatpush1.msra.mxu0 %v1424
    %1621 = vmatprep.subr.mxu0 %v1429
    %1622 = vmatpush1.msra.mxu0 %v1428
    %1623 = vmatprep.subr.mxu0 %v1433
    %1624 = vmatpush1.msra.mxu0 %v1432
    %1625 = vmatprep.subr.mxu0 %v1437
    %1626 = vmatpush1.msra.mxu0 %v1436
    %1627 = vmatprep.subr.mxu0 %v1441
    %1628 = vmatpush1.msra.mxu0 %v1440
    %1629 = vmatprep.subr.mxu0 %v1445
    %1630 = vmatpush1.msra.mxu0 %v1444
    %1631 = vmatprep.subr.mxu0 %v1449
    %1632 = vmatpush1.msra.mxu0 %v1448
    %1633 = vmatprep.subr.mxu0 %v1453
    %1634 = vmatpush1.msra.mxu0 %v1452
    %1635 = vmatprep.subr.mxu0 %v1457
    %1636 = vmatpush1.msra.mxu0 %v1456
    %1637 = vmatprep.subr.mxu0 %v1461
    %1638 = vmatpush1.msra.mxu0 %v1460
    %1639 = vmatprep.subr.mxu0 %v1465
    %1640 = vmatpush1.msra.mxu0 %v1464
    %1641 = vmatprep.subr.mxu0 %v1469
    %1642 = vmatpush1.msra.mxu0 %v1468
    %1643 = vmatprep.subr.mxu0 %v1473
    %1644 = vmatpush1.msra.mxu0 %v1472
    %1645 = vmatprep.subr.mxu0 %v1477
    %1646 = vmatpush1.msra.mxu0 %v1476
    %1647 = vmatprep.subr.mxu0 %v1481
    %1648 = vmatpush1.msra.mxu0 %v1480
    %1649 = vmatprep.subr.mxu0 %v1485
    %1650 = vmatpush1.msra.mxu0 %v1484
    %1651 = vmatprep.subr.mxu0 %v1489
    %1652 = vmatpush1.msra.mxu0 %v1488
    %1653 = vmatprep.subr.mxu0 %v1493
    %1654 = vmatpush1.msra.mxu0 %v1492
    %1655 = vmatprep.subr.mxu0 %v1497
    %1656 = vmatpush1.msra.mxu0 %v1496
    %1657 = vmatprep.subr.mxu0 %v1501
    %1658 = vmatpush1.msra.mxu0 %v1500
    %1659 = vmatprep.subr.mxu0 %v1505
    %1660 = vmatpush1.msra.mxu0 %v1504
    %1661 = vmatprep.subr.mxu0 %v1509
    %1662 = vmatpush1.msra.mxu0 %v1508
    %1663 = vmatprep.subr.mxu0 %v1513
    %1664 = vmatpush1.msra.mxu0 %v1512
    %1665 = vmatprep.subr.mxu0 %v1517
    %1666 = vmatpush1.msra.mxu0 %v1516
    %1667 = vmatprep.subr.mxu0 %v1521
    %1668 = vmatpush1.msra.mxu0 %v1520
    %1669 = vmatprep.subr.mxu0 %v1525
    %1670 = vmatpush1.msra.mxu0 %v1524
    %1671 = vmatprep.subr.mxu0 %v1529
    %1672 = vmatpush1.msra.mxu0 %v1528
    %1673 = vmatprep.subr.mxu0 %v1533
    %1674 = vmatpush1.msra.mxu0 %v1532
    %1675 = vmatprep.subr.mxu0 %v1537
    %1676 = vmatpush1.msra.mxu0 %v1536
    %1677 = vmatprep.subr.mxu0 %v1541
    %1678 = vmatpush1.msra.mxu0 %v1540
    %1679 = vmatprep.mubr.f32.mxu0 %v1287
    %1680 = vmatmul.mubr.f32.gmra.mrb[0].mxu0 %v1280
    %v1681 = vpop.f32.mrb[0].mxu0
    %v1682 = vadd.f32 %v1611, %v1681
    %v1683 = vpop.f32.mrb[0].mxu0
    %v1684 = vadd.f32 %v1613, %v1683
    %1685 = vdwg.mxu0
    %1686 = vmatprep.subr.mxu0 %v1291
    %1687 = vmatpush1.msra.mxu0 %v1290
    %1688 = vmatprep.subr.mxu0 %v1295
    %1689 = vmatpush1.msra.mxu0 %v1294
    %1690 = vmatprep.subr.mxu0 %v1299
    %1691 = vmatpush1.msra.mxu0 %v1298
    %1692 = vmatprep.subr.mxu0 %v1303
    %1693 = vmatpush1.msra.mxu0 %v1302
    %1694 = vmatprep.subr.mxu0 %v1307
    %1695 = vmatpush1.msra.mxu0 %v1306
    %1696 = vmatprep.subr.mxu0 %v1311
    %1697 = vmatpush1.msra.mxu0 %v1310
    %1698 = vmatprep.subr.mxu0 %v1315
    %1699 = vmatpush1.msra.mxu0 %v1314
    %1700 = vmatprep.subr.mxu0 %v1319
    %1701 = vmatpush1.msra.mxu0 %v1318
    %1702 = vmatprep.subr.mxu0 %v1323
    %1703 = vmatpush1.msra.mxu0 %v1322
    %1704 = vmatprep.subr.mxu0 %v1327
    %1705 = vmatpush1.msra.mxu0 %v1326
    %1706 = vmatprep.subr.mxu0 %v1331
    %1707 = vmatpush1.msra.mxu0 %v1330
    %1708 = vmatprep.subr.mxu0 %v1335
    %1709 = vmatpush1.msra.mxu0 %v1334
    %1710 = vmatprep.subr.mxu0 %v1339
    %1711 = vmatpush1.msra.mxu0 %v1338
    %1712 = vmatprep.subr.mxu0 %v1343
    %1713 = vmatpush1.msra.mxu0 %v1342
    %1714 = vmatprep.subr.mxu0 %v1347
    %1715 = vmatpush1.msra.mxu0 %v1346
    %1716 = vmatprep.subr.mxu0 %v1351
    %1717 = vmatpush1.msra.mxu0 %v1350
    %1718 = vmatprep.subr.mxu0 %v1355
    %1719 = vmatpush1.msra.mxu0 %v1354
    %1720 = vmatprep.subr.mxu0 %v1359
    %1721 = vmatpush1.msra.mxu0 %v1358
    %1722 = vmatprep.subr.mxu0 %v1363
    %1723 = vmatpush1.msra.mxu0 %v1362
    %1724 = vmatprep.subr.mxu0 %v1367
    %1725 = vmatpush1.msra.mxu0 %v1366
    %1726 = vmatprep.subr.mxu0 %v1371
    %1727 = vmatpush1.msra.mxu0 %v1370
    %1728 = vmatprep.subr.mxu0 %v1375
    %1729 = vmatpush1.msra.mxu0 %v1374
    %1730 = vmatprep.subr.mxu0 %v1379
    %1731 = vmatpush1.msra.mxu0 %v1378
    %1732 = vmatprep.subr.mxu0 %v1383
    %1733 = vmatpush1.msra.mxu0 %v1382
    %1734 = vmatprep.subr.mxu0 %v1387
    %1735 = vmatpush1.msra.mxu0 %v1386
    %1736 = vmatprep.subr.mxu0 %v1391
    %1737 = vmatpush1.msra.mxu0 %v1390
    %1738 = vmatprep.subr.mxu0 %v1395
    %1739 = vmatpush1.msra.mxu0 %v1394
    %1740 = vmatprep.subr.mxu0 %v1399
    %1741 = vmatpush1.msra.mxu0 %v1398
    %1742 = vmatprep.subr.mxu0 %v1403
    %1743 = vmatpush1.msra.mxu0 %v1402
    %1744 = vmatprep.subr.mxu0 %v1407
    %1745 = vmatpush1.msra.mxu0 %v1406
    %1746 = vmatprep.subr.mxu0 %v1411
    %1747 = vmatpush1.msra.mxu0 %v1410
    %1748 = vmatprep.subr.mxu0 %v1415
    %1749 = vmatpush1.msra.mxu0 %v1414
    %1750 = vmatprep.mubr.f32.mxu0 %v1273
    %1751 = vmatmul.mubr.f32.gmra.mrb[0].mxu0 %v1266
    %v1752 = vpop.f32.mrb[0].mxu0
    %v1753 = vadd.f32 0.0, %v1752
    %v1754 = vpop.f32.mrb[0].mxu0
    %v1755 = vadd.f32 0.0, %v1754
    %1756 = vdwg.mxu0
    %1757 = vmatprep.subr.mxu0 %v1419
    %1758 = vmatpush1.msra.mxu0 %v1418
    %1759 = vmatprep.subr.mxu0 %v1423
    %1760 = vmatpush1.msra.mxu0 %v1422
    %1761 = vmatprep.subr.mxu0 %v1427
    %1762 = vmatpush1.msra.mxu0 %v1426
    %1763 = vmatprep.subr.mxu0 %v1431
    %1764 = vmatpush1.msra.mxu0 %v1430
    %1765 = vmatprep.subr.mxu0 %v1435
    %1766 = vmatpush1.msra.mxu0 %v1434
    %1767 = vmatprep.subr.mxu0 %v1439
    %1768 = vmatpush1.msra.mxu0 %v1438
    %1769 = vmatprep.subr.mxu0 %v1443
    %1770 = vmatpush1.msra.mxu0 %v1442
    %1771 = vmatprep.subr.mxu0 %v1447
    %1772 = vmatpush1.msra.mxu0 %v1446
    %1773 = vmatprep.subr.mxu0 %v1451
    %1774 = vmatpush1.msra.mxu0 %v1450
    %1775 = vmatprep.subr.mxu0 %v1455
    %1776 = vmatpush1.msra.mxu0 %v1454
    %1777 = vmatprep.subr.mxu0 %v1459
    %1778 = vmatpush1.msra.mxu0 %v1458
    %1779 = vmatprep.subr.mxu0 %v1463
    %1780 = vmatpush1.msra.mxu0 %v1462
    %1781 = vmatprep.subr.mxu0 %v1467
    %1782 = vmatpush1.msra.mxu0 %v1466
    %1783 = vmatprep.subr.mxu0 %v1471
    %1784 = vmatpush1.msra.mxu0 %v1470
    %1785 = vmatprep.subr.mxu0 %v1475
    %1786 = vmatpush1.msra.mxu0 %v1474
    %1787 = vmatprep.subr.mxu0 %v1479
    %1788 = vmatpush1.msra.mxu0 %v1478
    %1789 = vmatprep.subr.mxu0 %v1483
    %1790 = vmatpush1.msra.mxu0 %v1482
    %1791 = vmatprep.subr.mxu0 %v1487
    %1792 = vmatpush1.msra.mxu0 %v1486
    %1793 = vmatprep.subr.mxu0 %v1491
    %1794 = vmatpush1.msra.mxu0 %v1490
    %1795 = vmatprep.subr.mxu0 %v1495
    %1796 = vmatpush1.msra.mxu0 %v1494
    %1797 = vmatprep.subr.mxu0 %v1499
    %1798 = vmatpush1.msra.mxu0 %v1498
    %1799 = vmatprep.subr.mxu0 %v1503
    %1800 = vmatpush1.msra.mxu0 %v1502
    %1801 = vmatprep.subr.mxu0 %v1507
    %1802 = vmatpush1.msra.mxu0 %v1506
    %1803 = vmatprep.subr.mxu0 %v1511
    %1804 = vmatpush1.msra.mxu0 %v1510
    %1805 = vmatprep.subr.mxu0 %v1515
    %1806 = vmatpush1.msra.mxu0 %v1514
    %1807 = vmatprep.subr.mxu0 %v1519
    %1808 = vmatpush1.msra.mxu0 %v1518
    %1809 = vmatprep.subr.mxu0 %v1523
    %1810 = vmatpush1.msra.mxu0 %v1522
    %1811 = vmatprep.subr.mxu0 %v1527
    %1812 = vmatpush1.msra.mxu0 %v1526
    %1813 = vmatprep.subr.mxu0 %v1531
    %1814 = vmatpush1.msra.mxu0 %v1530
    %1815 = vmatprep.subr.mxu0 %v1535
    %1816 = vmatpush1.msra.mxu0 %v1534
    %1817 = vmatprep.subr.mxu0 %v1539
    %1818 = vmatpush1.msra.mxu0 %v1538
    %1819 = vmatprep.subr.mxu0 %v1543
    %1820 = vmatpush1.msra.mxu0 %v1542
    %1821 = vmatprep.mubr.f32.mxu0 %v1287
    %1822 = vmatmul.mubr.f32.gmra.mrb[0].mxu0 %v1280
    %v1823 = vpop.f32.mrb[0].mxu0
    %v1824 = vadd.f32 %v1753, %v1823
    %v1825 = vpop.f32.mrb[0].mxu0
    %v1826 = vadd.f32 %v1755, %v1825
    %1827 = vdwg.mxu0
    %v1828 = vlaneseq
    %v1829 = vshrl.u32 %v1828, 7
    %v1830 = vsub.s32 0, %v1829
    %v1831 = vrot.slane %v1682, %v1830
    %v1832 = vlaneseq
    %v1833 = vshrl.u32 %v1832, 7
    %v1834 = vsub.s32 0, %v1833
    %v1835 = vrot.slane %v1684, %v1834
    %v1836 = vlaneseq
    %v1837 = vshrl.u32 %v1836, 7
    %v1838 = vsub.s32 0, %v1837
    %v1839 = vrot.slane %v1824, %v1838
    %v1840 = vlaneseq
    %v1841 = vshrl.u32 %v1840, 7
    %v1842 = vsub.s32 0, %v1841
    %v1843 = vrot.slane %v1826, %v1842
    %v1844 = vsub.f32 %v1173, %v1831
    %v1845 = vsub.f32 %v1175, %v1835
    %v1846 = vsub.f32 %v1250, %v1839
    %v1847 = vsub.f32 %v1252, %v1843
    %v1848 = vsub.f32 %v1179, %v1831
    %v1849 = vsub.f32 %v1181, %v1835
    %v1850 = vsub.f32 %v1256, %v1839
    %v1851 = vsub.f32 %v1258, %v1843
    %v1852 = vmul.f32 %v1844, %v1844
    %v1853 = vmul.f32 %v1845, %v1845
    %v1854 = vmul.f32 %v1846, %v1846
    %v1855 = vmul.f32 %v1847, %v1847
    %v1856 = vmul.f32 %v1848, %v1848
    %v1857 = vmul.f32 %v1849, %v1849
    %v1858 = vmul.f32 %v1850, %v1850
    %v1859 = vmul.f32 %v1851, %v1851
    %v1860 = vadd.f32 %v1852, %v1856
    %v1861 = vrot.slane %v1860, 4
    %v1862 = vadd.f32 %v1860, %v1861
    %v1863 = vrot.slane %v1862, 2
    %v1864 = vadd.f32 %v1862, %v1863
    %v1865 = vrot.slane %v1864, 1
    %v1866 = vadd.f32 %v1864, %v1865
    %v1867 = vadd.f32 %v1853, %v1857
    %v1868 = vrot.slane %v1867, 4
    %v1869 = vadd.f32 %v1867, %v1868
    %v1870 = vrot.slane %v1869, 2
    %v1871 = vadd.f32 %v1869, %v1870
    %v1872 = vrot.slane %v1871, 1
    %v1873 = vadd.f32 %v1871, %v1872
    %v1874 = vadd.f32 %v1854, %v1858
    %v1875 = vrot.slane %v1874, 4
    %v1876 = vadd.f32 %v1874, %v1875
    %v1877 = vrot.slane %v1876, 2
    %v1878 = vadd.f32 %v1876, %v1877
    %v1879 = vrot.slane %v1878, 1
    %v1880 = vadd.f32 %v1878, %v1879
    %v1881 = vadd.f32 %v1855, %v1859
    %v1882 = vrot.slane %v1881, 4
    %v1883 = vadd.f32 %v1881, %v1882
    %v1884 = vrot.slane %v1883, 2
    %v1885 = vadd.f32 %v1883, %v1884
    %v1886 = vrot.slane %v1885, 1
    %v1887 = vadd.f32 %v1885, %v1886
    %1888 = vmatprep.subr.mxu0 %v1289
    %1889 = vmatpush1.msra.mxu0 %v1288
    %1890 = vmatprep.subr.mxu0 %v1293
    %1891 = vmatpush1.msra.mxu0 %v1292
    %1892 = vmatprep.subr.mxu0 %v1297
    %1893 = vmatpush1.msra.mxu0 %v1296
    %1894 = vmatprep.subr.mxu0 %v1301
    %1895 = vmatpush1.msra.mxu0 %v1300
    %1896 = vmatprep.subr.mxu0 %v1305
    %1897 = vmatpush1.msra.mxu0 %v1304
    %1898 = vmatprep.subr.mxu0 %v1309
    %1899 = vmatpush1.msra.mxu0 %v1308
    %1900 = vmatprep.subr.mxu0 %v1313
    %1901 = vmatpush1.msra.mxu0 %v1312
    %1902 = vmatprep.subr.mxu0 %v1317
    %1903 = vmatpush1.msra.mxu0 %v1316
    %1904 = vmatprep.subr.mxu0 %v1321
    %1905 = vmatpush1.msra.mxu0 %v1320
    %1906 = vmatprep.subr.mxu0 %v1325
    %1907 = vmatpush1.msra.mxu0 %v1324
    %1908 = vmatprep.subr.mxu0 %v1329
    %1909 = vmatpush1.msra.mxu0 %v1328
    %1910 = vmatprep.subr.mxu0 %v1333
    %1911 = vmatpush1.msra.mxu0 %v1332
    %1912 = vmatprep.subr.mxu0 %v1337
    %1913 = vmatpush1.msra.mxu0 %v1336
    %1914 = vmatprep.subr.mxu0 %v1341
    %1915 = vmatpush1.msra.mxu0 %v1340
    %1916 = vmatprep.subr.mxu0 %v1345
    %1917 = vmatpush1.msra.mxu0 %v1344
    %1918 = vmatprep.subr.mxu0 %v1349
    %1919 = vmatpush1.msra.mxu0 %v1348
    %1920 = vmatprep.subr.mxu0 %v1353
    %1921 = vmatpush1.msra.mxu0 %v1352
    %1922 = vmatprep.subr.mxu0 %v1357
    %1923 = vmatpush1.msra.mxu0 %v1356
    %1924 = vmatprep.subr.mxu0 %v1361
    %1925 = vmatpush1.msra.mxu0 %v1360
    %1926 = vmatprep.subr.mxu0 %v1365
    %1927 = vmatpush1.msra.mxu0 %v1364
    %1928 = vmatprep.subr.mxu0 %v1369
    %1929 = vmatpush1.msra.mxu0 %v1368
    %1930 = vmatprep.subr.mxu0 %v1373
    %1931 = vmatpush1.msra.mxu0 %v1372
    %1932 = vmatprep.subr.mxu0 %v1377
    %1933 = vmatpush1.msra.mxu0 %v1376
    %1934 = vmatprep.subr.mxu0 %v1381
    %1935 = vmatpush1.msra.mxu0 %v1380
    %1936 = vmatprep.subr.mxu0 %v1385
    %1937 = vmatpush1.msra.mxu0 %v1384
    %1938 = vmatprep.subr.mxu0 %v1389
    %1939 = vmatpush1.msra.mxu0 %v1388
    %1940 = vmatprep.subr.mxu0 %v1393
    %1941 = vmatpush1.msra.mxu0 %v1392
    %1942 = vmatprep.subr.mxu0 %v1397
    %1943 = vmatpush1.msra.mxu0 %v1396
    %1944 = vmatprep.subr.mxu0 %v1401
    %1945 = vmatpush1.msra.mxu0 %v1400
    %1946 = vmatprep.subr.mxu0 %v1405
    %1947 = vmatpush1.msra.mxu0 %v1404
    %1948 = vmatprep.subr.mxu0 %v1409
    %1949 = vmatpush1.msra.mxu0 %v1408
    %1950 = vmatprep.subr.mxu0 %v1413
    %1951 = vmatpush1.msra.mxu0 %v1412
    %1952 = vmatprep.mubr.f32.mxu0 %v1873
    %1953 = vmatmul.mubr.f32.gmra.mrb[0].mxu0 %v1866
    %v1954 = vpop.f32.mrb[0].mxu0
    %v1955 = vadd.f32 1e-05, %v1954
    %v1956 = vpop.f32.mrb[0].mxu0
    %v1957 = vadd.f32 1e-05, %v1956
    %1958 = vdwg.mxu0
    %1959 = vmatprep.subr.mxu0 %v1417
    %1960 = vmatpush1.msra.mxu0 %v1416
    %1961 = vmatprep.subr.mxu0 %v1421
    %1962 = vmatpush1.msra.mxu0 %v1420
    %1963 = vmatprep.subr.mxu0 %v1425
    %1964 = vmatpush1.msra.mxu0 %v1424
    %1965 = vmatprep.subr.mxu0 %v1429
    %1966 = vmatpush1.msra.mxu0 %v1428
    %1967 = vmatprep.subr.mxu0 %v1433
    %1968 = vmatpush1.msra.mxu0 %v1432
    %1969 = vmatprep.subr.mxu0 %v1437
    %1970 = vmatpush1.msra.mxu0 %v1436
    %1971 = vmatprep.subr.mxu0 %v1441
    %1972 = vmatpush1.msra.mxu0 %v1440
    %1973 = vmatprep.subr.mxu0 %v1445
    %1974 = vmatpush1.msra.mxu0 %v1444
    %1975 = vmatprep.subr.mxu0 %v1449
    %1976 = vmatpush1.msra.mxu0 %v1448
    %1977 = vmatprep.subr.mxu0 %v1453
    %1978 = vmatpush1.msra.mxu0 %v1452
    %1979 = vmatprep.subr.mxu0 %v1457
    %1980 = vmatpush1.msra.mxu0 %v1456
    %1981 = vmatprep.subr.mxu0 %v1461
    %1982 = vmatpush1.msra.mxu0 %v1460
    %1983 = vmatprep.subr.mxu0 %v1465
    %1984 = vmatpush1.msra.mxu0 %v1464
    %1985 = vmatprep.subr.mxu0 %v1469
    %1986 = vmatpush1.msra.mxu0 %v1468
    %1987 = vmatprep.subr.mxu0 %v1473
    %1988 = vmatpush1.msra.mxu0 %v1472
    %1989 = vmatprep.subr.mxu0 %v1477
    %1990 = vmatpush1.msra.mxu0 %v1476
    %1991 = vmatprep.subr.mxu0 %v1481
    %1992 = vmatpush1.msra.mxu0 %v1480
    %1993 = vmatprep.subr.mxu0 %v1485
    %1994 = vmatpush1.msra.mxu0 %v1484
    %1995 = vmatprep.subr.mxu0 %v1489
    %1996 = vmatpush1.msra.mxu0 %v1488
    %1997 = vmatprep.subr.mxu0 %v1493
    %1998 = vmatpush1.msra.mxu0 %v1492
    %1999 = vmatprep.subr.mxu0 %v1497
    %2000 = vmatpush1.msra.mxu0 %v1496
    %2001 = vmatprep.subr.mxu0 %v1501
    %2002 = vmatpush1.msra.mxu0 %v1500
    %2003 = vmatprep.subr.mxu0 %v1505
    %2004 = vmatpush1.msra.mxu0 %v1504
    %2005 = vmatprep.subr.mxu0 %v1509
    %2006 = vmatpush1.msra.mxu0 %v1508
    %2007 = vmatprep.subr.mxu0 %v1513
    %2008 = vmatpush1.msra.mxu0 %v1512
    %2009 = vmatprep.subr.mxu0 %v1517
    %2010 = vmatpush1.msra.mxu0 %v1516
    %2011 = vmatprep.subr.mxu0 %v1521
    %2012 = vmatpush1.msra.mxu0 %v1520
    %2013 = vmatprep.subr.mxu0 %v1525
    %2014 = vmatpush1.msra.mxu0 %v1524
    %2015 = vmatprep.subr.mxu0 %v1529
    %2016 = vmatpush1.msra.mxu0 %v1528
    %2017 = vmatprep.subr.mxu0 %v1533
    %2018 = vmatpush1.msra.mxu0 %v1532
    %2019 = vmatprep.subr.mxu0 %v1537
    %2020 = vmatpush1.msra.mxu0 %v1536
    %2021 = vmatprep.subr.mxu0 %v1541
    %2022 = vmatpush1.msra.mxu0 %v1540
    %2023 = vmatprep.mubr.f32.mxu0 %v1887
    %2024 = vmatmul.mubr.f32.gmra.mrb[0].mxu0 %v1880
    %v2025 = vpop.f32.mrb[0].mxu0
    %v2026 = vadd.f32 %v1955, %v2025
    %v2027 = vpop.f32.mrb[0].mxu0
    %v2028 = vadd.f32 %v1957, %v2027
    %2029 = vdwg.mxu0
    %2030 = vmatprep.subr.mxu0 %v1291
    %2031 = vmatpush1.msra.mxu0 %v1290
    %2032 = vmatprep.subr.mxu0 %v1295
    %2033 = vmatpush1.msra.mxu0 %v1294
    %2034 = vmatprep.subr.mxu0 %v1299
    %2035 = vmatpush1.msra.mxu0 %v1298
    %2036 = vmatprep.subr.mxu0 %v1303
    %2037 = vmatpush1.msra.mxu0 %v1302
    %2038 = vmatprep.subr.mxu0 %v1307
    %2039 = vmatpush1.msra.mxu0 %v1306
    %2040 = vmatprep.subr.mxu0 %v1311
    %2041 = vmatpush1.msra.mxu0 %v1310
    %2042 = vmatprep.subr.mxu0 %v1315
    %2043 = vmatpush1.msra.mxu0 %v1314
    %2044 = vmatprep.subr.mxu0 %v1319
    %2045 = vmatpush1.msra.mxu0 %v1318
    %2046 = vmatprep.subr.mxu0 %v1323
    %2047 = vmatpush1.msra.mxu0 %v1322
    %2048 = vmatprep.subr.mxu0 %v1327
    %2049 = vmatpush1.msra.mxu0 %v1326
    %2050 = vmatprep.subr.mxu0 %v1331
    %2051 = vmatpush1.msra.mxu0 %v1330
    %2052 = vmatprep.subr.mxu0 %v1335
    %2053 = vmatpush1.msra.mxu0 %v1334
    %2054 = vmatprep.subr.mxu0 %v1339
    %2055 = vmatpush1.msra.mxu0 %v1338
    %2056 = vmatprep.subr.mxu0 %v1343
    %2057 = vmatpush1.msra.mxu0 %v1342
    %2058 = vmatprep.subr.mxu0 %v1347
    %2059 = vmatpush1.msra.mxu0 %v1346
    %2060 = vmatprep.subr.mxu0 %v1351
    %2061 = vmatpush1.msra.mxu0 %v1350
    %2062 = vmatprep.subr.mxu0 %v1355
    %2063 = vmatpush1.msra.mxu0 %v1354
    %2064 = vmatprep.subr.mxu0 %v1359
    %2065 = vmatpush1.msra.mxu0 %v1358
    %2066 = vmatprep.subr.mxu0 %v1363
    %2067 = vmatpush1.msra.mxu0 %v1362
    %2068 = vmatprep.subr.mxu0 %v1367
    %2069 = vmatpush1.msra.mxu0 %v1366
    %2070 = vmatprep.subr.mxu0 %v1371
    %2071 = vmatpush1.msra.mxu0 %v1370
    %2072 = vmatprep.subr.mxu0 %v1375
    %2073 = vmatpush1.msra.mxu0 %v1374
    %2074 = vmatprep.subr.mxu0 %v1379
    %2075 = vmatpush1.msra.mxu0 %v1378
    %2076 = vmatprep.subr.mxu0 %v1383
    %2077 = vmatpush1.msra.mxu0 %v1382
    %2078 = vmatprep.subr.mxu0 %v1387
    %2079 = vmatpush1.msra.mxu0 %v1386
    %2080 = vmatprep.subr.mxu0 %v1391
    %2081 = vmatpush1.msra.mxu0 %v1390
    %2082 = vmatprep.subr.mxu0 %v1395
    %2083 = vmatpush1.msra.mxu0 %v1394
    %2084 = vmatprep.subr.mxu0 %v1399
    %2085 = vmatpush1.msra.mxu0 %v1398
    %2086 = vmatprep.subr.mxu0 %v1403
    %2087 = vmatpush1.msra.mxu0 %v1402
    %2088 = vmatprep.subr.mxu0 %v1407
    %2089 = vmatpush1.msra.mxu0 %v1406
    %2090 = vmatprep.subr.mxu0 %v1411
    %2091 = vmatpush1.msra.mxu0 %v1410
    %2092 = vmatprep.subr.mxu0 %v1415
    %2093 = vmatpush1.msra.mxu0 %v1414
    %2094 = vmatprep.mubr.f32.mxu0 %v1873
    %2095 = vmatmul.mubr.f32.gmra.mrb[0].mxu0 %v1866
    %v2096 = vpop.f32.mrb[0].mxu0
    %v2097 = vadd.f32 1e-05, %v2096
    %v2098 = vpop.f32.mrb[0].mxu0
    %v2099 = vadd.f32 1e-05, %v2098
    %2100 = vdwg.mxu0
    %2101 = vmatprep.subr.mxu0 %v1419
    %2102 = vmatpush1.msra.mxu0 %v1418
    %2103 = vmatprep.subr.mxu0 %v1423
    %2104 = vmatpush1.msra.mxu0 %v1422
    %2105 = vmatprep.subr.mxu0 %v1427
    %2106 = vmatpush1.msra.mxu0 %v1426
    %2107 = vmatprep.subr.mxu0 %v1431
    %2108 = vmatpush1.msra.mxu0 %v1430
    %2109 = vmatprep.subr.mxu0 %v1435
    %2110 = vmatpush1.msra.mxu0 %v1434
    %2111 = vmatprep.subr.mxu0 %v1439
    %2112 = vmatpush1.msra.mxu0 %v1438
    %2113 = vmatprep.subr.mxu0 %v1443
    %2114 = vmatpush1.msra.mxu0 %v1442
    %2115 = vmatprep.subr.mxu0 %v1447
    %2116 = vmatpush1.msra.mxu0 %v1446
    %2117 = vmatprep.subr.mxu0 %v1451
    %2118 = vmatpush1.msra.mxu0 %v1450
    %2119 = vmatprep.subr.mxu0 %v1455
    %2120 = vmatpush1.msra.mxu0 %v1454
    %2121 = vmatprep.subr.mxu0 %v1459
    %2122 = vmatpush1.msra.mxu0 %v1458
    %2123 = vmatprep.subr.mxu0 %v1463
    %2124 = vmatpush1.msra.mxu0 %v1462
    %2125 = vmatprep.subr.mxu0 %v1467
    %2126 = vmatpush1.msra.mxu0 %v1466
    %2127 = vmatprep.subr.mxu0 %v1471
    %2128 = vmatpush1.msra.mxu0 %v1470
    %2129 = vmatprep.subr.mxu0 %v1475
    %2130 = vmatpush1.msra.mxu0 %v1474
    %2131 = vmatprep.subr.mxu0 %v1479
    %2132 = vmatpush1.msra.mxu0 %v1478
    %2133 = vmatprep.subr.mxu0 %v1483
    %2134 = vmatpush1.msra.mxu0 %v1482
    %2135 = vmatprep.subr.mxu0 %v1487
    %2136 = vmatpush1.msra.mxu0 %v1486
    %2137 = vmatprep.subr.mxu0 %v1491
    %2138 = vmatpush1.msra.mxu0 %v1490
    %2139 = vmatprep.subr.mxu0 %v1495
    %2140 = vmatpush1.msra.mxu0 %v1494
    %2141 = vmatprep.subr.mxu0 %v1499
    %2142 = vmatpush1.msra.mxu0 %v1498
    %2143 = vmatprep.subr.mxu0 %v1503
    %2144 = vmatpush1.msra.mxu0 %v1502
    %2145 = vmatprep.subr.mxu0 %v1507
    %2146 = vmatpush1.msra.mxu0 %v1506
    %2147 = vmatprep.subr.mxu0 %v1511
    %2148 = vmatpush1.msra.mxu0 %v1510
    %2149 = vmatprep.subr.mxu0 %v1515
    %2150 = vmatpush1.msra.mxu0 %v1514
    %2151 = vmatprep.subr.mxu0 %v1519
    %2152 = vmatpush1.msra.mxu0 %v1518
    %2153 = vmatprep.subr.mxu0 %v1523
    %2154 = vmatpush1.msra.mxu0 %v1522
    %2155 = vmatprep.subr.mxu0 %v1527
    %2156 = vmatpush1.msra.mxu0 %v1526
    %2157 = vmatprep.subr.mxu0 %v1531
    %2158 = vmatpush1.msra.mxu0 %v1530
    %2159 = vmatprep.subr.mxu0 %v1535
    %2160 = vmatpush1.msra.mxu0 %v1534
    %2161 = vmatprep.subr.mxu0 %v1539
    %2162 = vmatpush1.msra.mxu0 %v1538
    %2163 = vmatprep.subr.mxu0 %v1543
    %2164 = vmatpush1.msra.mxu0 %v1542
    %2165 = vmatprep.mubr.f32.mxu0 %v1887
    %2166 = vmatmul.mubr.f32.gmra.mrb[0].mxu0 %v1880
    %v2167 = vpop.f32.mrb[0].mxu0
    %v2168 = vadd.f32 %v2097, %v2167
    %v2169 = vpop.f32.mrb[0].mxu0
    %v2170 = vadd.f32 %v2099, %v2169
    %2171 = vdwg.mxu0
    %v2172 = vrsqrt.pop %v2026
    %v2173 = vrsqrt.pop %v2028
    %v2174 = vrsqrt.pop %v2168
    %v2175 = vrsqrt.pop %v2170
    %v2176 = vlaneseq
    %v2177 = vshrl.u32 %v2176, 7
    %v2178 = vsub.s32 0, %v2177
    %v2179 = vrot.slane %v2172, %v2178
    %v2180 = vlaneseq
    %v2181 = vshrl.u32 %v2180, 7
    %v2182 = vsub.s32 0, %v2181
    %v2183 = vrot.slane %v2173, %v2182
    %v2184 = vlaneseq
    %v2185 = vshrl.u32 %v2184, 7
    %v2186 = vsub.s32 0, %v2185
    %v2187 = vrot.slane %v2174, %v2186
    %v2188 = vlaneseq
    %v2189 = vshrl.u32 %v2188, 7
    %v2190 = vsub.s32 0, %v2189
    %v2191 = vrot.slane %v2175, %v2190
    %v2192 = vmul.f32 %v1844, %v2179
    %v2193 = vmul.f32 %v1845, %v2183
    %v2194 = vmul.f32 %v1846, %v2187
    %v2195 = vmul.f32 %v1847, %v2191
    %v2196 = vmul.f32 %v1848, %v2179
    %v2197 = vmul.f32 %v1849, %v2183
    %v2198 = vmul.f32 %v1850, %v2187
    %v2199 = vmul.f32 %v1851, %v2191
    %v2200 = vld [vmem:[%s12] sm:$0xf]
    %v2202 = vlaneseq
    %v2203 = vshrl.u32 %v2202, 7
    %v2204 = vsub.s32 0, %v2203
    %v2205 = vrot.slane %v2200, %v2204
    %v2206 = vlaneseq
    %v2207 = vshrl.u32 %v2206, 7
    %v2208 = vsub.s32 1, %v2207
    %v2209 = vrot.slane %v2200, %v2208
    %v2210 = vlaneseq
    %v2211 = vshrl.u32 %v2210, 7
    %v2212 = vsub.s32 2, %v2211
    %v2213 = vrot.slane %v2200, %v2212
    %v2214 = vlaneseq
    %v2215 = vshrl.u32 %v2214, 7
    %v2216 = vsub.s32 3, %v2215
    %v2217 = vrot.slane %v2200, %v2216
    %v2222 = vmul.f32 %v2192, %v2205
    %v2223 = vmul.f32 %v2193, %v2209
    %v2224 = vmul.f32 %v2194, %v2213
    %v2225 = vmul.f32 %v2195, %v2217
    %v2226 = vmul.f32 %v2196, %v2205
    %v2227 = vmul.f32 %v2197, %v2209
    %v2228 = vmul.f32 %v2198, %v2213
    %v2229 = vmul.f32 %v2199, %v2217
    %v2230 = vld [vmem:[%s13] sm:$0xf]
    %v2232 = vlaneseq
    %v2233 = vshrl.u32 %v2232, 7
    %v2234 = vsub.s32 0, %v2233
    %v2235 = vrot.slane %v2230, %v2234
    %v2236 = vlaneseq
    %v2237 = vshrl.u32 %v2236, 7
    %v2238 = vsub.s32 1, %v2237
    %v2239 = vrot.slane %v2230, %v2238
    %v2240 = vlaneseq
    %v2241 = vshrl.u32 %v2240, 7
    %v2242 = vsub.s32 2, %v2241
    %v2243 = vrot.slane %v2230, %v2242
    %v2244 = vlaneseq
    %v2245 = vshrl.u32 %v2244, 7
    %v2246 = vsub.s32 3, %v2245
    %v2247 = vrot.slane %v2230, %v2246
    %v2252 = vadd.f32 %v2222, %v2235
    %v2253 = vadd.f32 %v2223, %v2239
    %v2254 = vadd.f32 %v2224, %v2243
    %v2255 = vadd.f32 %v2225, %v2247
    %v2256 = vadd.f32 %v2226, %v2235
    %v2257 = vadd.f32 %v2227, %v2239
    %v2258 = vadd.f32 %v2228, %v2243
    %v2259 = vadd.f32 %v2229, %v2247
    %v2260 = vadd.f32 %v2252, %v61
    %v2261 = vadd.f32 %v2253, %v62
    %v2262 = vadd.f32 %v2254, %v63
    %v2263 = vadd.f32 %v2255, %v64
    %v2264 = vadd.f32 %v2256, %v65
    %v2265 = vadd.f32 %v2257, %v66
    %v2266 = vadd.f32 %v2258, %v67
    %v2267 = vadd.f32 %v2259, %v68
    %v2268 = vmax.f32 %v2260, 0.0
    %v2269 = vmax.f32 %v2261, 0.0
    %v2270 = vmax.f32 %v2262, 0.0
    %v2271 = vmax.f32 %v2263, 0.0
    %v2272 = vmax.f32 %v2264, 0.0
    %v2273 = vmax.f32 %v2265, 0.0
    %v2274 = vmax.f32 %v2266, 0.0
    %v2275 = vmax.f32 %v2267, 0.0
    %2276 = vst [vmem:[%s14] sm:$0xff] %v2268
    %2277 = vst [vmem:[%s14 + $0x8] sm:$0xff] %v2269
    %2278 = vst [vmem:[%s14 + $0x10] sm:$0xff] %v2270
    %2279 = vst [vmem:[%s14 + $0x18] sm:$0xff] %v2271
    %2280 = vst [vmem:[%s14 + $0x20] sm:$0xff] %v2272
    %2281 = vst [vmem:[%s14 + $0x28] sm:$0xff] %v2273
    %2282 = vst [vmem:[%s14 + $0x30] sm:$0xff] %v2274
    %2283 = vst [vmem:[%s14 + $0x38] sm:$0xff] %v2275
    // Predicated region
    $region62: #{bottleneck_forward.1} parent=1 // pred_check
      _
    $region63: #{bottleneck_forward.1} parent=1 // pred_check_branch
      %2285 = sbr.rel (0) target = $region65
    $region64: #{bottleneck_forward.1} parent=1 // pred_region
      _
    $region65: #{bottleneck_forward.1} parent=1 // pred_fallthru
      _
    // Predicated region
    $region66: #{bottleneck_forward.1} parent=1 // pred_check
      _
    $region67: #{bottleneck_forward.1} parent=1 // pred_check_branch
      %2287 = sbr.rel (0) target = $region69
    $region68: #{bottleneck_forward.1} parent=1 // pred_region
      _
    $region69: #{bottleneck_forward.1} parent=1 // pred_fallthru
      _
    %2288 = vsyncpa [#allocation3], 1

</llo_original>
